<compile_context>
chip_gen: v7x
topology: tpu7x:2x2x1
jax: 0.10.0
libtpu: 0.0.40
codegen_flags: <defaults>
</compile_context>

<pallas_src>
import functools

import jax
import jax.numpy as jnp
from jax.experimental import pallas as pl
from jax.experimental.pallas import tpu as pltpu

HIDDEN = 576
IN_DIM = 4


def _round_up(x, m):
    return (x + m - 1) // m * m


def _hamiltonian_kernel(x_ref, w1_ref, b1_ref, w2_ref, b2_ref, w3t_ref, b3_ref,
                        o_ref):
    x = x_ref[...]                                   # (TB, 4)  f32
    w1 = w1_ref[...]                                 # (4, 576) f32

    # ---- Layer 1: K=4 contraction -> 4 broadcast FMAs on the VPU (skip the MXU).
    h1 = b1_ref[...] + x[:, 0:1] * w1[0:1, :]        # (TB, 576)
    h1 = h1 + x[:, 1:2] * w1[1:2, :]
    h1 = h1 + x[:, 2:3] * w1[2:3, :]
    h1 = h1 + x[:, 3:4] * w1[3:4, :]
    h1 = jnp.tanh(h1)

    # ---- Layer 2: 576x576 on the MXU, bf16 inputs, f32 accumulation.
    h2 = jnp.tanh(
        jnp.dot(h1.astype(w2_ref.dtype), w2_ref[...],
                preferred_element_type=jnp.float32)
        + b2_ref[...])                               # (TB, 576)

    # ---- Layer 3: N=1 output -> VPU multiply + XLU lane reduction (skip the MXU).
    out = jnp.sum(h2 * w3t_ref[...], axis=-1, keepdims=True) + b3_ref[...]
    o_ref[...] = out.astype(o_ref.dtype)             # (TB, 1)


@functools.partial(jax.jit, static_argnames=("block_b",))
def hamiltonian_net_forward(state, params, *, block_b=512):
    """state: (B, 4) float32; params: dict of pre-transposed (in, out) weights."""
    w1 = params["w1"].astype(jnp.float32)                      # (4, 576)
    b1 = params["b1"].reshape(1, HIDDEN).astype(jnp.float32)   # (1, 576)
    w2 = params["w2"].astype(jnp.bfloat16)                     # (576, 576) bf16 on MXU
    b2 = params["b2"].reshape(1, HIDDEN).astype(jnp.float32)   # (1, 576)
    w3t = params["w3"].reshape(1, HIDDEN).astype(jnp.float32)  # (1, 576) lane-aligned
    b3 = params["b3"].reshape(1, 1).astype(jnp.float32)        # (1, 1)

    B = state.shape[0]
    Bp = _round_up(B, 8)                  # sublane alignment
    tb = Bp if Bp <= block_b else block_b
    Bp = _round_up(Bp, tb)
    if Bp != B:
        state = jnp.pad(state, ((0, Bp - B), (0, 0)))
    state = state.astype(jnp.float32)

    grid = (Bp // tb,)

    # weights/biases: constant index_map -> fetched once, resident across the grid
    resident = lambda shape: pl.BlockSpec(shape, lambda i: tuple(0 for _ in shape))

    cost = pl.CostEstimate(
        flops=2 * Bp * (IN_DIM * HIDDEN + HIDDEN * HIDDEN + HIDDEN),
        transcendentals=2 * Bp * HIDDEN,
        bytes_accessed=(Bp * IN_DIM * 4 + Bp * 4            # state in, out
                        + IN_DIM * HIDDEN * 4 + HIDDEN * 4  # w1, b1
                        + HIDDEN * HIDDEN * 2 + HIDDEN * 4  # w2 (bf16), b2
                        + HIDDEN * 4 + 4))                  # w3, b3

    out = pl.pallas_call(
        _hamiltonian_kernel,
        out_shape=jax.ShapeDtypeStruct((Bp, 1), jnp.float32),
        grid=grid,
        in_specs=[
            pl.BlockSpec((tb, IN_DIM), lambda i: (i, 0)),   # state tile
            resident((IN_DIM, HIDDEN)),                     # w1
            resident((1, HIDDEN)),                          # b1
            resident((HIDDEN, HIDDEN)),                     # w2 (bf16)
            resident((1, HIDDEN)),                          # b2
            resident((1, HIDDEN)),                          # w3^T
            resident((1, 1)),                               # b3
        ],
        out_specs=pl.BlockSpec((tb, 1), lambda i: (i, 0)),
        compiler_params=pltpu.CompilerParams(
            dimension_semantics=("parallel",)),
        cost_estimate=cost,
    )(state, w1, b1, w2, b2, w3t, b3)

    return out[:B]


def init_params(key):
    """Mirror the PyTorch module: weights ~ N(0, 0.1), biases = 0, stored (in, out)."""
    k1, k2, k3 = jax.random.split(key, 3)
    return {
        "w1": 0.1 * jax.random.normal(k1, (IN_DIM, HIDDEN), jnp.float32),
        "b1": jnp.zeros((1, HIDDEN), jnp.float32),
        "w2": 0.1 * jax.random.normal(k2, (HIDDEN, HIDDEN), jnp.float32),
        "b2": jnp.zeros((1, HIDDEN), jnp.float32),
        "w3": 0.1 * jax.random.normal(k3, (HIDDEN, 1), jnp.float32),
        "b3": jnp.zeros((1, 1), jnp.float32),
    }


if __name__ == "__main__":
    key = jax.random.PRNGKey(0)
    pkey, xkey = jax.random.split(key)

    params = init_params(pkey)
    state = jax.random.normal(xkey, (8, IN_DIM), jnp.float32)   # batch=8, state dim=4

    out = hamiltonian_net_forward(state, params)
    out = jax.block_until_ready(out)
    assert out.shape == (8, 1)

    # Full-f32 reference (same math as the PyTorch module).
    ref_f32 = jnp.tanh(state @ params["w1"] + params["b1"])
    ref_f32 = jnp.tanh(ref_f32 @ params["w2"] + params["b2"])
    ref_f32 = ref_f32 @ params["w3"] + params["b3"]

    # Mixed-precision reference matching the kernel's bf16 middle layer.
    h1 = jnp.tanh(state @ params["w1"] + params["b1"])
    h2 = jnp.tanh(
        jnp.dot(h1.astype(jnp.bfloat16), params["w2"].astype(jnp.bfloat16),
                preferred_element_type=jnp.float32) + params["b2"])
    ref_mixed = h2 @ params["w3"] + params["b3"]

    assert jnp.allclose(out, ref_mixed, atol=2e-2, rtol=2e-2), "mismatch vs bf16 ref"
    assert jnp.allclose(out, ref_f32, atol=1e-1, rtol=2e-2), "mismatch vs f32 ref"

    print("KERNEL_OK")
</pallas_src>

<mosaic_0001>
module attributes {stable_mosaic.version = 11 : i64} {
  func.func @_hamiltonian_kernel(%arg0: i32, %arg1: memref<8x4xf32, #tpu.memory_space<vmem>>, %arg2: memref<4x576xf32, #tpu.memory_space<vmem>>, %arg3: memref<1x576xf32, #tpu.memory_space<vmem>>, %arg4: memref<576x576xbf16, #tpu.memory_space<vmem>>, %arg5: memref<1x576xf32, #tpu.memory_space<vmem>>, %arg6: memref<1x576xf32, #tpu.memory_space<vmem>>, %arg7: memref<1x1xf32, #tpu.memory_space<vmem>>, %arg8: memref<8x1xf32, #tpu.memory_space<vmem>>) attributes {dimension_semantics = [#tpu.dimension_semantics<parallel>], iteration_bounds = array<i64: 1>, scalar_prefetch = 0 : i64, scratch_operands = 0 : i64, tpu.core_type = #tpu.core_type<tc>, window_params = [{transform_indices = @transform_0, window_bounds = array<i64: 8, 4>}, {pipeline_mode = #tpu.pipeline_mode<synchronous>, transform_indices = @transform_1, window_bounds = array<i64: 4, 576>}, {pipeline_mode = #tpu.pipeline_mode<synchronous>, transform_indices = @transform_2, window_bounds = array<i64: 1, 576>}, {pipeline_mode = #tpu.pipeline_mode<synchronous>, transform_indices = @transform_3, window_bounds = array<i64: 576, 576>}, {pipeline_mode = #tpu.pipeline_mode<synchronous>, transform_indices = @transform_4, window_bounds = array<i64: 1, 576>}, {pipeline_mode = #tpu.pipeline_mode<synchronous>, transform_indices = @transform_5, window_bounds = array<i64: 1, 576>}, {pipeline_mode = #tpu.pipeline_mode<synchronous>, transform_indices = @transform_6, window_bounds = array<i64: 1, 1>}, {transform_indices = @transform_7, window_bounds = array<i64: 8, 1>}]} {
    %c0 = arith.constant 0 : index
    %c0_0 = arith.constant 0 : index
    %0 = vector.load %arg1[%c0, %c0_0] : memref<8x4xf32, #tpu.memory_space<vmem>>, vector<8x4xf32>
    %c0_1 = arith.constant 0 : index
    %c0_2 = arith.constant 0 : index
    %1 = vector.load %arg2[%c0_1, %c0_2] : memref<4x576xf32, #tpu.memory_space<vmem>>, vector<4x576xf32>
    %c0_3 = arith.constant 0 : index
    %c0_4 = arith.constant 0 : index
    %2 = vector.load %arg3[%c0_3, %c0_4] : memref<1x576xf32, #tpu.memory_space<vmem>>, vector<1x576xf32>
    %3 = vector.extract_strided_slice %0 {offsets = [0, 0], sizes = [8, 1], strides = [1, 1]} : vector<8x4xf32> to vector<8x1xf32>
    %4 = vector.extract_strided_slice %1 {offsets = [0, 0], sizes = [1, 576], strides = [1, 1]} : vector<4x576xf32> to vector<1x576xf32>
    %5 = vector.broadcast %3 : vector<8x1xf32> to vector<8x576xf32>
    %6 = vector.broadcast %4 : vector<1x576xf32> to vector<8x576xf32>
    %7 = arith.mulf %5, %6 : vector<8x576xf32>
    %8 = vector.broadcast %2 : vector<1x576xf32> to vector<8x576xf32>
    %9 = arith.addf %8, %7 : vector<8x576xf32>
    %10 = vector.extract_strided_slice %0 {offsets = [0, 1], sizes = [8, 1], strides = [1, 1]} : vector<8x4xf32> to vector<8x1xf32>
    %11 = vector.extract_strided_slice %1 {offsets = [1, 0], sizes = [1, 576], strides = [1, 1]} : vector<4x576xf32> to vector<1x576xf32>
    %12 = vector.broadcast %10 : vector<8x1xf32> to vector<8x576xf32>
    %13 = vector.broadcast %11 : vector<1x576xf32> to vector<8x576xf32>
    %14 = arith.mulf %12, %13 : vector<8x576xf32>
    %15 = arith.addf %9, %14 : vector<8x576xf32>
    %16 = vector.extract_strided_slice %0 {offsets = [0, 2], sizes = [8, 1], strides = [1, 1]} : vector<8x4xf32> to vector<8x1xf32>
    %17 = vector.extract_strided_slice %1 {offsets = [2, 0], sizes = [1, 576], strides = [1, 1]} : vector<4x576xf32> to vector<1x576xf32>
    %18 = vector.broadcast %16 : vector<8x1xf32> to vector<8x576xf32>
    %19 = vector.broadcast %17 : vector<1x576xf32> to vector<8x576xf32>
    %20 = arith.mulf %18, %19 : vector<8x576xf32>
    %21 = arith.addf %15, %20 : vector<8x576xf32>
    %22 = vector.extract_strided_slice %0 {offsets = [0, 3], sizes = [8, 1], strides = [1, 1]} : vector<8x4xf32> to vector<8x1xf32>
    %23 = vector.extract_strided_slice %1 {offsets = [3, 0], sizes = [1, 576], strides = [1, 1]} : vector<4x576xf32> to vector<1x576xf32>
    %24 = vector.broadcast %22 : vector<8x1xf32> to vector<8x576xf32>
    %25 = vector.broadcast %23 : vector<1x576xf32> to vector<8x576xf32>
    %26 = arith.mulf %24, %25 : vector<8x576xf32>
    %27 = arith.addf %21, %26 : vector<8x576xf32>
    %28 = math.tanh %27 : vector<8x576xf32>
    %29 = arith.truncf %28 : vector<8x576xf32> to vector<8x576xbf16>
    %c0_5 = arith.constant 0 : index
    %c0_6 = arith.constant 0 : index
    %30 = vector.load %arg4[%c0_5, %c0_6] : memref<576x576xbf16, #tpu.memory_space<vmem>>, vector<576x576xbf16>
    %cst = arith.constant dense<0.000000e+00> : vector<8x576xf32>
    %31 = tpu.matmul %29, %30, %cst {dimension_numbers = #tpu.dot_dimension_numbers<[1], [0], [0], [1], [0, 0, 1, 1], [], []>} : vector<8x576xbf16>, vector<576x576xbf16>, vector<8x576xf32> -> vector<8x576xf32>
    %c0_7 = arith.constant 0 : index
    %c0_8 = arith.constant 0 : index
    %32 = vector.load %arg5[%c0_7, %c0_8] : memref<1x576xf32, #tpu.memory_space<vmem>>, vector<1x576xf32>
    %33 = vector.broadcast %32 : vector<1x576xf32> to vector<8x576xf32>
    %34 = arith.addf %31, %33 : vector<8x576xf32>
    %35 = math.tanh %34 : vector<8x576xf32>
    %c0_9 = arith.constant 0 : index
    %c0_10 = arith.constant 0 : index
    %36 = vector.load %arg6[%c0_9, %c0_10] : memref<1x576xf32, #tpu.memory_space<vmem>>, vector<1x576xf32>
    %37 = vector.broadcast %36 : vector<1x576xf32> to vector<8x576xf32>
    %38 = arith.mulf %35, %37 : vector<8x576xf32>
    %cst_11 = arith.constant dense<0.000000e+00> : vector<8xf32>
    %39 = vector.multi_reduction <add>, %38, %cst_11 [1] : vector<8x576xf32> to vector<8xf32>
    %40 = vector.shape_cast %39 : vector<8xf32> to vector<8x1xf32>
    %c0_12 = arith.constant 0 : index
    %c0_13 = arith.constant 0 : index
    %41 = vector.load %arg7[%c0_12, %c0_13] : memref<1x1xf32, #tpu.memory_space<vmem>>, vector<1x1xf32>
    %42 = vector.broadcast %41 : vector<1x1xf32> to vector<8x1xf32>
    %43 = arith.addf %40, %42 : vector<8x1xf32>
    %c0_14 = arith.constant 0 : index
    %c0_15 = arith.constant 0 : index
    %44 = vector.load %arg8[%c0_14, %c0_15] : memref<8x1xf32, #tpu.memory_space<vmem>>, vector<8x1xf32>
    tpu.vector_store %arg8[%c0_14, %c0_15], %43 {strides = array<i32>} : memref<8x1xf32, #tpu.memory_space<vmem>>, vector<8x1xf32>,
    return
  }
  func.func @transform_0(%arg0: i32) -> (i32, i32) {
    %c0_i32 = arith.constant 0 : i32
    %c0_i32_0 = arith.constant 0 : i32
    return %arg0, %c0_i32 : i32, i32
  }
  func.func @transform_1(%arg0: i32) -> (i32, i32) {
    %c0_i32 = arith.constant 0 : i32
    %c0_i32_0 = arith.constant 0 : i32
    %c0_i32_1 = arith.constant 0 : i32
    return %c0_i32, %c0_i32_0 : i32, i32
  }
  func.func @transform_2(%arg0: i32) -> (i32, i32) {
    %c0_i32 = arith.constant 0 : i32
    %c0_i32_0 = arith.constant 0 : i32
    %c0_i32_1 = arith.constant 0 : i32
    return %c0_i32, %c0_i32_0 : i32, i32
  }
  func.func @transform_3(%arg0: i32) -> (i32, i32) {
    %c0_i32 = arith.constant 0 : i32
    %c0_i32_0 = arith.constant 0 : i32
    %c0_i32_1 = arith.constant 0 : i32
    return %c0_i32, %c0_i32_0 : i32, i32
  }
  func.func @transform_4(%arg0: i32) -> (i32, i32) {
    %c0_i32 = arith.constant 0 : i32
    %c0_i32_0 = arith.constant 0 : i32
    %c0_i32_1 = arith.constant 0 : i32
    return %c0_i32, %c0_i32_0 : i32, i32
  }
  func.func @transform_5(%arg0: i32) -> (i32, i32) {
    %c0_i32 = arith.constant 0 : i32
    %c0_i32_0 = arith.constant 0 : i32
    %c0_i32_1 = arith.constant 0 : i32
    return %c0_i32, %c0_i32_0 : i32, i32
  }
  func.func @transform_6(%arg0: i32) -> (i32, i32) {
    %c0_i32 = arith.constant 0 : i32
    %c0_i32_0 = arith.constant 0 : i32
    %c0_i32_1 = arith.constant 0 : i32
    return %c0_i32, %c0_i32_0 : i32, i32
  }
  func.func @transform_7(%arg0: i32) -> (i32, i32) {
    %c0_i32 = arith.constant 0 : i32
    %c0_i32_0 = arith.constant 0 : i32
    return %arg0, %c0_i32 : i32, i32
  }
}

</mosaic_0001>

<llo_original>
// kernel: hamiltonian_net_forward.1
$region0: #{hamiltonian_net_forward.1}
  #allocation0 [shape = 'u32[]', space=smem, size = 0x4, offset = 0x4, fixed_abs, tag = 'smem constant byte address 0x4 - core index']
  #allocation1 [shape = 'u32[144,128]{1,0:T(1,128)}', space=vmem, size = 0x12000, scoped, tag = 'internal scratch']
  #allocation2 [shape = 'f32[1,1]{1,0:T(1,128)S(1)}', space=vmem, size = 0x200, scoped, tag = 'scoped memory for hamiltonian_net_forward.1']
  %s0 = inlined_call_operand.vmem [shape: f32[8,4], index: 0, kind: input, shape index: {}]
  %s1 = inlined_call_operand.vmem [shape: f32[4,576], index: 1, kind: input, shape index: {}]
  %s2 = inlined_call_operand.vmem [shape: f32[1,576], index: 2, kind: input, shape index: {}]
  %s3 = inlined_call_operand.vmem [shape: bf16[576,576], index: 3, kind: input, shape index: {}]
  %s4 = inlined_call_operand.vmem [shape: f32[1,576], index: 4, kind: input, shape index: {}]
  %s5 = inlined_call_operand.vmem [shape: f32[1,576], index: 5, kind: input, shape index: {}]
  %s6 = inlined_call_operand.<no memory space> [shape: f32[1,1], index: 6, kind: input, shape index: {}]
  %s7 = inlined_call_operand.vmem [shape: f32[8,1], index: 7, kind: output, shape index: {}]
  %s8 = sld [smem:[#allocation0]]
  $region38: #{hamiltonian_net_forward.1} parent=0
    _
  %s10 = ssub.s32 1, %s8
  %s11 = scalar_select 0, %s10, %s8
  %v12 = vstv %s6
  %13 = vst [vmem:[#allocation2] sm:$0x1] %v12
  // Predicated region
  $region2: #{hamiltonian_net_forward.1} parent=0 // pred_check
    _
  $region3: #{hamiltonian_net_forward.1} parent=0 // pred_check_branch
    %15 = sbr.rel (0) target = $region5
  $region4: #{hamiltonian_net_forward.1} parent=0 // pred_region
    _
  $region5: #{hamiltonian_net_forward.1} parent=0 // pred_fallthru
    _
  // Predicated region
  $region6: #{hamiltonian_net_forward.1} parent=0 // pred_check
    _
  $region7: #{hamiltonian_net_forward.1} parent=0 // pred_check_branch
    %17 = sbr.rel (0) target = $region9
  $region8: #{hamiltonian_net_forward.1} parent=0 // pred_region
    _
  $region9: #{hamiltonian_net_forward.1} parent=0 // pred_fallthru
    _
  // Predicated region
  $region10: #{hamiltonian_net_forward.1} parent=0 // pred_check
    _
  $region11: #{hamiltonian_net_forward.1} parent=0 // pred_check_branch
    %19 = sbr.rel (0) target = $region13
  $region12: #{hamiltonian_net_forward.1} parent=0 // pred_region
    _
  $region13: #{hamiltonian_net_forward.1} parent=0 // pred_fallthru
    _
  // Predicated region
  $region14: #{hamiltonian_net_forward.1} parent=0 // pred_check
    _
  $region15: #{hamiltonian_net_forward.1} parent=0 // pred_check_branch
    %21 = sbr.rel (0) target = $region17
  $region16: #{hamiltonian_net_forward.1} parent=0 // pred_region
    _
  $region17: #{hamiltonian_net_forward.1} parent=0 // pred_fallthru
    _
  // Predicated region
  $region18: #{hamiltonian_net_forward.1} parent=0 // pred_check
    _
  $region19: #{hamiltonian_net_forward.1} parent=0 // pred_check_branch
    %23 = sbr.rel (0) target = $region21
  $region20: #{hamiltonian_net_forward.1} parent=0 // pred_region
    _
  $region21: #{hamiltonian_net_forward.1} parent=0 // pred_fallthru
    _
  // Predicated region
  $region22: #{hamiltonian_net_forward.1} parent=0 // pred_check
    _
  $region23: #{hamiltonian_net_forward.1} parent=0 // pred_check_branch
    %25 = sbr.rel (0) target = $region25
  $region24: #{hamiltonian_net_forward.1} parent=0 // pred_region
    _
  $region25: #{hamiltonian_net_forward.1} parent=0 // pred_fallthru
    _
  // Predicated region
  $region26: #{hamiltonian_net_forward.1} parent=0 // pred_check
    _
  $region27: #{hamiltonian_net_forward.1} parent=0 // pred_check_branch
    %27 = sbr.rel (0) target = $region29
  $region28: #{hamiltonian_net_forward.1} parent=0 // pred_region
    _
  $region29: #{hamiltonian_net_forward.1} parent=0 // pred_fallthru
    _
  %v29 = vld [vmem:[%s0] sm:$0xff]
  %v30 = vld [vmem:[%s1] sm:$0xff]
  %v31 = vld [vmem:[%s1 + $0x8] sm:$0xff]
  %v32 = vld [vmem:[%s1 + $0x10] sm:$0xf]
  %v33 = vld [vmem:[%s2] sm:$0x1f]
  %35 = vset.pattern.permute.xlu0 0
  %36 = vperm.xlu0 %35, %v29
  %v37 = vpop.permute.xlu0 %36
  %v42 = vlaneseq
  %v43 = vshrl.u32 %v42, 7
  %v44 = vsub.s32 0, %v43
  %v45 = vrot.slane %v30, %v44
  %v46 = vlaneseq
  %v47 = vshrl.u32 %v46, 7
  %v48 = vsub.s32 4, %v47
  %v49 = vrot.slane %v30, %v48
  %v50 = vlaneseq
  %v51 = vshrl.u32 %v50, 7
  %v52 = vsub.s32 0, %v51
  %v53 = vrot.slane %v31, %v52
  %v54 = vlaneseq
  %v55 = vshrl.u32 %v54, 7
  %v56 = vsub.s32 4, %v55
  %v57 = vrot.slane %v31, %v56
  %v58 = vlaneseq
  %v59 = vshrl.u32 %v58, 7
  %v60 = vsub.s32 0, %v59
  %v61 = vrot.slane %v32, %v60
  %v67 = vlaneseq
  %v68 = vshrl.u32 %v67, 7
  %v69 = vsub.s32 0, %v68
  %v70 = vrot.slane %v45, %v69
  %v71 = vlaneseq
  %v72 = vshrl.u32 %v71, 7
  %v73 = vsub.s32 0, %v72
  %v74 = vrot.slane %v49, %v73
  %v75 = vlaneseq
  %v76 = vshrl.u32 %v75, 7
  %v77 = vsub.s32 0, %v76
  %v78 = vrot.slane %v53, %v77
  %v79 = vlaneseq
  %v80 = vshrl.u32 %v79, 7
  %v81 = vsub.s32 0, %v80
  %v82 = vrot.slane %v57, %v81
  %v83 = vlaneseq
  %v84 = vshrl.u32 %v83, 7
  %v85 = vsub.s32 0, %v84
  %v86 = vrot.slane %v61, %v85
  %v87 = vmul.f32 %v37, %v70
  %v88 = vmul.f32 %v37, %v74
  %v89 = vmul.f32 %v37, %v78
  %v90 = vmul.f32 %v37, %v82
  %v91 = vmul.f32 %v37, %v86
  %v93 = vlaneseq
  %v94 = vshrl.u32 %v93, 7
  %v95 = vsub.s32 0, %v94
  %v96 = vrot.slane %v33, %v95
  %v97 = vlaneseq
  %v98 = vshrl.u32 %v97, 7
  %v99 = vsub.s32 1, %v98
  %v100 = vrot.slane %v33, %v99
  %v101 = vlaneseq
  %v102 = vshrl.u32 %v101, 7
  %v103 = vsub.s32 2, %v102
  %v104 = vrot.slane %v33, %v103
  %v105 = vlaneseq
  %v106 = vshrl.u32 %v105, 7
  %v107 = vsub.s32 3, %v106
  %v108 = vrot.slane %v33, %v107
  %v109 = vlaneseq
  %v110 = vshrl.u32 %v109, 7
  %v111 = vsub.s32 4, %v110
  %v112 = vrot.slane %v33, %v111
  %v118 = vadd.f32 %v96, %v87
  %v119 = vadd.f32 %v100, %v88
  %v120 = vadd.f32 %v104, %v89
  %v121 = vadd.f32 %v108, %v90
  %v122 = vadd.f32 %v112, %v91
  %123 = vset.pattern.permute.xlu0 1
  %124 = vperm.xlu0 %123, %v29
  %v125 = vpop.permute.xlu0 %124
  %v127 = vlaneseq
  %v128 = vshrl.u32 %v127, 7
  %v129 = vsub.s32 1, %v128
  %v130 = vrot.slane %v30, %v129
  %v131 = vlaneseq
  %v132 = vshrl.u32 %v131, 7
  %v133 = vsub.s32 5, %v132
  %v134 = vrot.slane %v30, %v133
  %v135 = vlaneseq
  %v136 = vshrl.u32 %v135, 7
  %v137 = vsub.s32 1, %v136
  %v138 = vrot.slane %v31, %v137
  %v139 = vlaneseq
  %v140 = vshrl.u32 %v139, 7
  %v141 = vsub.s32 5, %v140
  %v142 = vrot.slane %v31, %v141
  %v143 = vlaneseq
  %v144 = vshrl.u32 %v143, 7
  %v145 = vsub.s32 1, %v144
  %v146 = vrot.slane %v32, %v145
  %v152 = vlaneseq
  %v153 = vshrl.u32 %v152, 7
  %v154 = vsub.s32 1, %v153
  %v155 = vrot.slane %v130, %v154
  %v156 = vlaneseq
  %v157 = vshrl.u32 %v156, 7
  %v158 = vsub.s32 1, %v157
  %v159 = vrot.slane %v134, %v158
  %v160 = vlaneseq
  %v161 = vshrl.u32 %v160, 7
  %v162 = vsub.s32 1, %v161
  %v163 = vrot.slane %v138, %v162
  %v164 = vlaneseq
  %v165 = vshrl.u32 %v164, 7
  %v166 = vsub.s32 1, %v165
  %v167 = vrot.slane %v142, %v166
  %v168 = vlaneseq
  %v169 = vshrl.u32 %v168, 7
  %v170 = vsub.s32 1, %v169
  %v171 = vrot.slane %v146, %v170
  %v172 = vmul.f32 %v125, %v155
  %v173 = vmul.f32 %v125, %v159
  %v174 = vmul.f32 %v125, %v163
  %v175 = vmul.f32 %v125, %v167
  %v176 = vmul.f32 %v125, %v171
  %v177 = vadd.f32 %v118, %v172
  %v178 = vadd.f32 %v119, %v173
  %v179 = vadd.f32 %v120, %v174
  %v180 = vadd.f32 %v121, %v175
  %v181 = vadd.f32 %v122, %v176
  %182 = vset.pattern.permute.xlu0 2
  %183 = vperm.xlu0 %182, %v29
  %v184 = vpop.permute.xlu0 %183
  %v186 = vlaneseq
  %v187 = vshrl.u32 %v186, 7
  %v188 = vsub.s32 2, %v187
  %v189 = vrot.slane %v30, %v188
  %v190 = vlaneseq
  %v191 = vshrl.u32 %v190, 7
  %v192 = vsub.s32 6, %v191
  %v193 = vrot.slane %v30, %v192
  %v194 = vlaneseq
  %v195 = vshrl.u32 %v194, 7
  %v196 = vsub.s32 2, %v195
  %v197 = vrot.slane %v31, %v196
  %v198 = vlaneseq
  %v199 = vshrl.u32 %v198, 7
  %v200 = vsub.s32 6, %v199
  %v201 = vrot.slane %v31, %v200
  %v202 = vlaneseq
  %v203 = vshrl.u32 %v202, 7
  %v204 = vsub.s32 2, %v203
  %v205 = vrot.slane %v32, %v204
  %v211 = vlaneseq
  %v212 = vshrl.u32 %v211, 7
  %v213 = vsub.s32 2, %v212
  %v214 = vrot.slane %v189, %v213
  %v215 = vlaneseq
  %v216 = vshrl.u32 %v215, 7
  %v217 = vsub.s32 2, %v216
  %v218 = vrot.slane %v193, %v217
  %v219 = vlaneseq
  %v220 = vshrl.u32 %v219, 7
  %v221 = vsub.s32 2, %v220
  %v222 = vrot.slane %v197, %v221
  %v223 = vlaneseq
  %v224 = vshrl.u32 %v223, 7
  %v225 = vsub.s32 2, %v224
  %v226 = vrot.slane %v201, %v225
  %v227 = vlaneseq
  %v228 = vshrl.u32 %v227, 7
  %v229 = vsub.s32 2, %v228
  %v230 = vrot.slane %v205, %v229
  %v231 = vmul.f32 %v184, %v214
  %v232 = vmul.f32 %v184, %v218
  %v233 = vmul.f32 %v184, %v222
  %v234 = vmul.f32 %v184, %v226
  %v235 = vmul.f32 %v184, %v230
  %v236 = vadd.f32 %v177, %v231
  %v237 = vadd.f32 %v178, %v232
  %v238 = vadd.f32 %v179, %v233
  %v239 = vadd.f32 %v180, %v234
  %v240 = vadd.f32 %v181, %v235
  %241 = vset.pattern.permute.xlu0 3
  %242 = vperm.xlu0 %241, %v29
  %v243 = vpop.permute.xlu0 %242
  %v245 = vlaneseq
  %v246 = vshrl.u32 %v245, 7
  %v247 = vsub.s32 3, %v246
  %v248 = vrot.slane %v30, %v247
  %v249 = vlaneseq
  %v250 = vshrl.u32 %v249, 7
  %v251 = vsub.s32 7, %v250
  %v252 = vrot.slane %v30, %v251
  %v253 = vlaneseq
  %v254 = vshrl.u32 %v253, 7
  %v255 = vsub.s32 3, %v254
  %v256 = vrot.slane %v31, %v255
  %v257 = vlaneseq
  %v258 = vshrl.u32 %v257, 7
  %v259 = vsub.s32 7, %v258
  %v260 = vrot.slane %v31, %v259
  %v261 = vlaneseq
  %v262 = vshrl.u32 %v261, 7
  %v263 = vsub.s32 3, %v262
  %v264 = vrot.slane %v32, %v263
  %v270 = vlaneseq
  %v271 = vshrl.u32 %v270, 7
  %v272 = vsub.s32 3, %v271
  %v273 = vrot.slane %v248, %v272
  %v274 = vlaneseq
  %v275 = vshrl.u32 %v274, 7
  %v276 = vsub.s32 3, %v275
  %v277 = vrot.slane %v252, %v276
  %v278 = vlaneseq
  %v279 = vshrl.u32 %v278, 7
  %v280 = vsub.s32 3, %v279
  %v281 = vrot.slane %v256, %v280
  %v282 = vlaneseq
  %v283 = vshrl.u32 %v282, 7
  %v284 = vsub.s32 3, %v283
  %v285 = vrot.slane %v260, %v284
  %v286 = vlaneseq
  %v287 = vshrl.u32 %v286, 7
  %v288 = vsub.s32 3, %v287
  %v289 = vrot.slane %v264, %v288
  %v290 = vmul.f32 %v243, %v273
  %v291 = vmul.f32 %v243, %v277
  %v292 = vmul.f32 %v243, %v281
  %v293 = vmul.f32 %v243, %v285
  %v294 = vmul.f32 %v243, %v289
  %v295 = vadd.f32 %v236, %v290
  %v296 = vadd.f32 %v237, %v291
  %v297 = vadd.f32 %v238, %v292
  %v298 = vadd.f32 %v239, %v293
  %v299 = vadd.f32 %v240, %v294
  %v300 = vtanh.pop %v295
  %v301 = vtanh.pop %v296
  %v302 = vtanh.pop %v297
  %v303 = vtanh.pop %v298
  %v304 = vtanh.pop %v299
  %v305 = vpack.c.bf16 %v300, %v300
  %v306 = vpack.c.bf16 %v301, %v301
  %v307 = vpack.c.bf16 %v302, %v302
  %v308 = vpack.c.bf16 %v303, %v303
  %v309 = vpack.c.bf16 %v304, %v304
  %v310 = vld [vmem:[%s3] sm:$0xff]
  %v311 = vld [vmem:[%s3 + $0x8] sm:$0xff]
  %v312 = vld [vmem:[%s3 + $0x10] sm:$0xf]
  %v313 = vld [vmem:[%s3 + $0x14] sm:$0xff]
  %v314 = vld [vmem:[%s3 + $0x1c] sm:$0xff]
  %v315 = vld [vmem:[%s3 + $0x24] sm:$0xf]
  %v316 = vld [vmem:[%s3 + $0x28] sm:$0xff]
  %v317 = vld [vmem:[%s3 + $0x30] sm:$0xff]
  %v318 = vld [vmem:[%s3 + $0x38] sm:$0xf]
  %v319 = vld [vmem:[%s3 + $0x3c] sm:$0xff]
  %v320 = vld [vmem:[%s3 + $0x44] sm:$0xff]
  %v321 = vld [vmem:[%s3 + $0x4c] sm:$0xf]
  %v322 = vld [vmem:[%s3 + $0x50] sm:$0xff]
  %v323 = vld [vmem:[%s3 + $0x58] sm:$0xff]
  %v324 = vld [vmem:[%s3 + $0x60] sm:$0xf]
  %v325 = vld [vmem:[%s3 + $0x64] sm:$0xff]
  %v326 = vld [vmem:[%s3 + $0x6c] sm:$0xff]
  %v327 = vld [vmem:[%s3 + $0x74] sm:$0xf]
  %v328 = vld [vmem:[%s3 + $0x78] sm:$0xff]
  %v329 = vld [vmem:[%s3 + $0x80] sm:$0xff]
  %v330 = vld [vmem:[%s3 + $0x88] sm:$0xf]
  %v331 = vld [vmem:[%s3 + $0x8c] sm:$0xff]
  %v332 = vld [vmem:[%s3 + $0x94] sm:$0xff]
  %v333 = vld [vmem:[%s3 + $0x9c] sm:$0xf]
  %v334 = vld [vmem:[%s3 + $0xa0] sm:$0xff]
  %v335 = vld [vmem:[%s3 + $0xa8] sm:$0xff]
  %v336 = vld [vmem:[%s3 + $0xb0] sm:$0xf]
  %v337 = vld [vmem:[%s3 + $0xb4] sm:$0xff]
  %v338 = vld [vmem:[%s3 + $0xbc] sm:$0xff]
  %v339 = vld [vmem:[%s3 + $0xc4] sm:$0xf]
  %v340 = vld [vmem:[%s3 + $0xc8] sm:$0xff]
  %v341 = vld [vmem:[%s3 + $0xd0] sm:$0xff]
  %v342 = vld [vmem:[%s3 + $0xd8] sm:$0xf]
  %v343 = vld [vmem:[%s3 + $0xdc] sm:$0xff]
  %v344 = vld [vmem:[%s3 + $0xe4] sm:$0xff]
  %v345 = vld [vmem:[%s3 + $0xec] sm:$0xf]
  %v346 = vld [vmem:[%s3 + $0xf0] sm:$0xff]
  %v347 = vld [vmem:[%s3 + $0xf8] sm:$0xff]
  %v348 = vld [vmem:[%s3 + $0x100] sm:$0xf]
  %v349 = vld [vmem:[%s3 + $0x104] sm:$0xff]
  %v350 = vld [vmem:[%s3 + $0x10c] sm:$0xff]
  %v351 = vld [vmem:[%s3 + $0x114] sm:$0xf]
  %v352 = vld [vmem:[%s3 + $0x118] sm:$0xff]
  %v353 = vld [vmem:[%s3 + $0x120] sm:$0xff]
  %v354 = vld [vmem:[%s3 + $0x128] sm:$0xf]
  %v355 = vld [vmem:[%s3 + $0x12c] sm:$0xff]
  %v356 = vld [vmem:[%s3 + $0x134] sm:$0xff]
  %v357 = vld [vmem:[%s3 + $0x13c] sm:$0xf]
  %v358 = vld [vmem:[%s3 + $0x140] sm:$0xff]
  %v359 = vld [vmem:[%s3 + $0x148] sm:$0xff]
  %v360 = vld [vmem:[%s3 + $0x150] sm:$0xf]
  %v361 = vld [vmem:[%s3 + $0x154] sm:$0xff]
  %v362 = vld [vmem:[%s3 + $0x15c] sm:$0xff]
  %v363 = vld [vmem:[%s3 + $0x164] sm:$0xf]
  %v364 = vld [vmem:[%s3 + $0x168] sm:$0xff]
  %v365 = vld [vmem:[%s3 + $0x170] sm:$0xff]
  %v366 = vld [vmem:[%s3 + $0x178] sm:$0xf]
  %v367 = vld [vmem:[%s3 + $0x17c] sm:$0xff]
  %v368 = vld [vmem:[%s3 + $0x184] sm:$0xff]
  %v369 = vld [vmem:[%s3 + $0x18c] sm:$0xf]
  %v370 = vld [vmem:[%s3 + $0x190] sm:$0xff]
  %v371 = vld [vmem:[%s3 + $0x198] sm:$0xff]
  %v372 = vld [vmem:[%s3 + $0x1a0] sm:$0xf]
  %v373 = vld [vmem:[%s3 + $0x1a4] sm:$0xff]
  %v374 = vld [vmem:[%s3 + $0x1ac] sm:$0xff]
  %v375 = vld [vmem:[%s3 + $0x1b4] sm:$0xf]
  %v376 = vld [vmem:[%s3 + $0x1b8] sm:$0xff]
  %v377 = vld [vmem:[%s3 + $0x1c0] sm:$0xff]
  %v378 = vld [vmem:[%s3 + $0x1c8] sm:$0xf]
  %v379 = vld [vmem:[%s3 + $0x1cc] sm:$0xff]
  %v380 = vld [vmem:[%s3 + $0x1d4] sm:$0xff]
  %v381 = vld [vmem:[%s3 + $0x1dc] sm:$0xf]
  %v382 = vld [vmem:[%s3 + $0x1e0] sm:$0xff]
  %v383 = vld [vmem:[%s3 + $0x1e8] sm:$0xff]
  %v384 = vld [vmem:[%s3 + $0x1f0] sm:$0xf]
  %v385 = vld [vmem:[%s3 + $0x1f4] sm:$0xff]
  %v386 = vld [vmem:[%s3 + $0x1fc] sm:$0xff]
  %v387 = vld [vmem:[%s3 + $0x204] sm:$0xf]
  %v388 = vld [vmem:[%s3 + $0x208] sm:$0xff]
  %v389 = vld [vmem:[%s3 + $0x210] sm:$0xff]
  %v390 = vld [vmem:[%s3 + $0x218] sm:$0xf]
  %v391 = vld [vmem:[%s3 + $0x21c] sm:$0xff]
  %v392 = vld [vmem:[%s3 + $0x224] sm:$0xff]
  %v393 = vld [vmem:[%s3 + $0x22c] sm:$0xf]
  %v394 = vld [vmem:[%s3 + $0x230] sm:$0xff]
  %v395 = vld [vmem:[%s3 + $0x238] sm:$0xff]
  %v396 = vld [vmem:[%s3 + $0x240] sm:$0xf]
  %v397 = vld [vmem:[%s3 + $0x244] sm:$0xff]
  %v398 = vld [vmem:[%s3 + $0x24c] sm:$0xff]
  %v399 = vld [vmem:[%s3 + $0x254] sm:$0xf]
  %v400 = vld [vmem:[%s3 + $0x258] sm:$0xff]
  %v401 = vld [vmem:[%s3 + $0x260] sm:$0xff]
  %v402 = vld [vmem:[%s3 + $0x268] sm:$0xf]
  %v403 = vld [vmem:[%s3 + $0x26c] sm:$0xff]
  %v404 = vld [vmem:[%s3 + $0x274] sm:$0xff]
  %v405 = vld [vmem:[%s3 + $0x27c] sm:$0xf]
  %v406 = vld [vmem:[%s3 + $0x280] sm:$0xff]
  %v407 = vld [vmem:[%s3 + $0x288] sm:$0xff]
  %v408 = vld [vmem:[%s3 + $0x290] sm:$0xf]
  %v409 = vld [vmem:[%s3 + $0x294] sm:$0xff]
  %v410 = vld [vmem:[%s3 + $0x29c] sm:$0xff]
  %v411 = vld [vmem:[%s3 + $0x2a4] sm:$0xf]
  %v412 = vld [vmem:[%s3 + $0x2a8] sm:$0xff]
  %v413 = vld [vmem:[%s3 + $0x2b0] sm:$0xff]
  %v414 = vld [vmem:[%s3 + $0x2b8] sm:$0xf]
  %v415 = vld [vmem:[%s3 + $0x2bc] sm:$0xff]
  %v416 = vld [vmem:[%s3 + $0x2c4] sm:$0xff]
  %v417 = vld [vmem:[%s3 + $0x2cc] sm:$0xf]
  %v418 = vld [vmem:[%s3 + $0x2d0] sm:$0xff]
  %v419 = vld [vmem:[%s3 + $0x2d8] sm:$0xff]
  %v420 = vld [vmem:[%s3 + $0x2e0] sm:$0xf]
  %v421 = vld [vmem:[%s3 + $0x2e4] sm:$0xff]
  %v422 = vld [vmem:[%s3 + $0x2ec] sm:$0xff]
  %v423 = vld [vmem:[%s3 + $0x2f4] sm:$0xf]
  %v424 = vld [vmem:[%s3 + $0x2f8] sm:$0xff]
  %v425 = vld [vmem:[%s3 + $0x300] sm:$0xff]
  %v426 = vld [vmem:[%s3 + $0x308] sm:$0xf]
  %v427 = vld [vmem:[%s3 + $0x30c] sm:$0xff]
  %v428 = vld [vmem:[%s3 + $0x314] sm:$0xff]
  %v429 = vld [vmem:[%s3 + $0x31c] sm:$0xf]
  %v430 = vld [vmem:[%s3 + $0x320] sm:$0xff]
  %v431 = vld [vmem:[%s3 + $0x328] sm:$0xff]
  %v432 = vld [vmem:[%s3 + $0x330] sm:$0xf]
  %v433 = vld [vmem:[%s3 + $0x334] sm:$0xff]
  %v434 = vld [vmem:[%s3 + $0x33c] sm:$0xff]
  %v435 = vld [vmem:[%s3 + $0x344] sm:$0xf]
  %v436 = vld [vmem:[%s3 + $0x348] sm:$0xff]
  %v437 = vld [vmem:[%s3 + $0x350] sm:$0xff]
  %v438 = vld [vmem:[%s3 + $0x358] sm:$0xf]
  %v439 = vld [vmem:[%s3 + $0x35c] sm:$0xff]
  %v440 = vld [vmem:[%s3 + $0x364] sm:$0xff]
  %v441 = vld [vmem:[%s3 + $0x36c] sm:$0xf]
  %v442 = vld [vmem:[%s3 + $0x370] sm:$0xff]
  %v443 = vld [vmem:[%s3 + $0x378] sm:$0xff]
  %v444 = vld [vmem:[%s3 + $0x380] sm:$0xf]
  %v445 = vld [vmem:[%s3 + $0x384] sm:$0xff]
  %v446 = vld [vmem:[%s3 + $0x38c] sm:$0xff]
  %v447 = vld [vmem:[%s3 + $0x394] sm:$0xf]
  %v448 = vld [vmem:[%s3 + $0x398] sm:$0xff]
  %v449 = vld [vmem:[%s3 + $0x3a0] sm:$0xff]
  %v450 = vld [vmem:[%s3 + $0x3a8] sm:$0xf]
  %v451 = vld [vmem:[%s3 + $0x3ac] sm:$0xff]
  %v452 = vld [vmem:[%s3 + $0x3b4] sm:$0xff]
  %v453 = vld [vmem:[%s3 + $0x3bc] sm:$0xf]
  %v454 = vld [vmem:[%s3 + $0x3c0] sm:$0xff]
  %v455 = vld [vmem:[%s3 + $0x3c8] sm:$0xff]
  %v456 = vld [vmem:[%s3 + $0x3d0] sm:$0xf]
  %v457 = vld [vmem:[%s3 + $0x3d4] sm:$0xff]
  %v458 = vld [vmem:[%s3 + $0x3dc] sm:$0xff]
  %v459 = vld [vmem:[%s3 + $0x3e4] sm:$0xf]
  %v460 = vld [vmem:[%s3 + $0x3e8] sm:$0xff]
  %v461 = vld [vmem:[%s3 + $0x3f0] sm:$0xff]
  %v462 = vld [vmem:[%s3 + $0x3f8] sm:$0xf]
  %v463 = vld [vmem:[%s3 + $0x3fc] sm:$0xff]
  %v464 = vld [vmem:[%s3 + $0x404] sm:$0xff]
  %v465 = vld [vmem:[%s3 + $0x40c] sm:$0xf]
  %v466 = vld [vmem:[%s3 + $0x410] sm:$0xff]
  %v467 = vld [vmem:[%s3 + $0x418] sm:$0xff]
  %v468 = vld [vmem:[%s3 + $0x420] sm:$0xf]
  %v469 = vld [vmem:[%s3 + $0x424] sm:$0xff]
  %v470 = vld [vmem:[%s3 + $0x42c] sm:$0xff]
  %v471 = vld [vmem:[%s3 + $0x434] sm:$0xf]
  %v472 = vld [vmem:[%s3 + $0x438] sm:$0xff]
  %v473 = vld [vmem:[%s3 + $0x440] sm:$0xff]
  %v474 = vld [vmem:[%s3 + $0x448] sm:$0xf]
  %v475 = vld [vmem:[%s3 + $0x44c] sm:$0xff]
  %v476 = vld [vmem:[%s3 + $0x454] sm:$0xff]
  %v477 = vld [vmem:[%s3 + $0x45c] sm:$0xf]
  %v478 = vld [vmem:[%s3 + $0x460] sm:$0xff]
  %v479 = vld [vmem:[%s3 + $0x468] sm:$0xff]
  %v480 = vld [vmem:[%s3 + $0x470] sm:$0xf]
  %v481 = vld [vmem:[%s3 + $0x474] sm:$0xff]
  %v482 = vld [vmem:[%s3 + $0x47c] sm:$0xff]
  %v483 = vld [vmem:[%s3 + $0x484] sm:$0xf]
  %v484 = vld [vmem:[%s3 + $0x488] sm:$0xff]
  %v485 = vld [vmem:[%s3 + $0x490] sm:$0xff]
  %v486 = vld [vmem:[%s3 + $0x498] sm:$0xf]
  %v487 = vld [vmem:[%s3 + $0x49c] sm:$0xff]
  %v488 = vld [vmem:[%s3 + $0x4a4] sm:$0xff]
  %v489 = vld [vmem:[%s3 + $0x4ac] sm:$0xf]
  %v490 = vld [vmem:[%s3 + $0x4b0] sm:$0xff]
  %v491 = vld [vmem:[%s3 + $0x4b8] sm:$0xff]
  %v492 = vld [vmem:[%s3 + $0x4c0] sm:$0xf]
  %v493 = vld [vmem:[%s3 + $0x4c4] sm:$0xff]
  %v494 = vld [vmem:[%s3 + $0x4cc] sm:$0xff]
  %v495 = vld [vmem:[%s3 + $0x4d4] sm:$0xf]
  %v496 = vld [vmem:[%s3 + $0x4d8] sm:$0xff]
  %v497 = vld [vmem:[%s3 + $0x4e0] sm:$0xff]
  %v498 = vld [vmem:[%s3 + $0x4e8] sm:$0xf]
  %v499 = vld [vmem:[%s3 + $0x4ec] sm:$0xff]
  %v500 = vld [vmem:[%s3 + $0x4f4] sm:$0xff]
  %v501 = vld [vmem:[%s3 + $0x4fc] sm:$0xf]
  %v502 = vld [vmem:[%s3 + $0x500] sm:$0xff]
  %v503 = vld [vmem:[%s3 + $0x508] sm:$0xff]
  %v504 = vld [vmem:[%s3 + $0x510] sm:$0xf]
  %v505 = vld [vmem:[%s3 + $0x514] sm:$0xff]
  %v506 = vld [vmem:[%s3 + $0x51c] sm:$0xff]
  %v507 = vld [vmem:[%s3 + $0x524] sm:$0xf]
  %v508 = vld [vmem:[%s3 + $0x528] sm:$0xff]
  %v509 = vld [vmem:[%s3 + $0x530] sm:$0xff]
  %v510 = vld [vmem:[%s3 + $0x538] sm:$0xf]
  %v511 = vld [vmem:[%s3 + $0x53c] sm:$0xff]
  %v512 = vld [vmem:[%s3 + $0x544] sm:$0xff]
  %v513 = vld [vmem:[%s3 + $0x54c] sm:$0xf]
  %v514 = vld [vmem:[%s3 + $0x550] sm:$0xff]
  %v515 = vld [vmem:[%s3 + $0x558] sm:$0xff]
  %v516 = vld [vmem:[%s3 + $0x560] sm:$0xf]
  %v517 = vld [vmem:[%s3 + $0x564] sm:$0xff]
  %v518 = vld [vmem:[%s3 + $0x56c] sm:$0xff]
  %v519 = vld [vmem:[%s3 + $0x574] sm:$0xf]
  %v520 = vld [vmem:[%s3 + $0x578] sm:$0xff]
  %v521 = vld [vmem:[%s3 + $0x580] sm:$0xff]
  %v522 = vld [vmem:[%s3 + $0x588] sm:$0xf]
  %v523 = vld [vmem:[%s3 + $0x58c] sm:$0xff]
  %v524 = vld [vmem:[%s3 + $0x594] sm:$0xff]
  %v525 = vld [vmem:[%s3 + $0x59c] sm:$0xf]
  %v526 = vld [vmem:[%s4] sm:$0x1f]
  %v528 = vlaneseq
  %v529 = vshrl.u32 %v528, 7
  %v530 = vsub.s32 0, %v529
  %v531 = vrot.slane %v526, %v530
  %v532 = vlaneseq
  %v533 = vshrl.u32 %v532, 7
  %v534 = vsub.s32 1, %v533
  %v535 = vrot.slane %v526, %v534
  %v536 = vlaneseq
  %v537 = vshrl.u32 %v536, 7
  %v538 = vsub.s32 2, %v537
  %v539 = vrot.slane %v526, %v538
  %v540 = vlaneseq
  %v541 = vshrl.u32 %v540, 7
  %v542 = vsub.s32 3, %v541
  %v543 = vrot.slane %v526, %v542
  %v544 = vlaneseq
  %v545 = vshrl.u32 %v544, 7
  %v546 = vsub.s32 4, %v545
  %v547 = vrot.slane %v526, %v546
  %v769 = vunpack.c.l.b16 %v310
  %v770 = vunpack.c.h.b16 %v310
  %v771 = vunpack.c.l.b16 %v311
  %v772 = vunpack.c.h.b16 %v311
  %v773 = vunpack.c.l.b16 %v312
  %v774 = vunpack.c.l.b16 %v313
  %v775 = vunpack.c.h.b16 %v313
  %v776 = vunpack.c.l.b16 %v314
  %v777 = vunpack.c.h.b16 %v314
  %v778 = vunpack.c.l.b16 %v315
  %v779 = vunpack.c.l.b16 %v316
  %v780 = vunpack.c.h.b16 %v316
  %v781 = vunpack.c.l.b16 %v317
  %v782 = vunpack.c.h.b16 %v317
  %v783 = vunpack.c.l.b16 %v318
  %v784 = vunpack.c.l.b16 %v319
  %v785 = vunpack.c.h.b16 %v319
  %v786 = vunpack.c.l.b16 %v320
  %v787 = vunpack.c.h.b16 %v320
  %v788 = vunpack.c.l.b16 %v321
  %v789 = vunpack.c.l.b16 %v322
  %v790 = vunpack.c.h.b16 %v322
  %v791 = vunpack.c.l.b16 %v323
  %v792 = vunpack.c.h.b16 %v323
  %v793 = vunpack.c.l.b16 %v324
  %v794 = vunpack.c.l.b16 %v325
  %v795 = vunpack.c.h.b16 %v325
  %v796 = vunpack.c.l.b16 %v326
  %v797 = vunpack.c.h.b16 %v326
  %v798 = vunpack.c.l.b16 %v327
  %v799 = vunpack.c.l.b16 %v328
  %v800 = vunpack.c.h.b16 %v328
  %v801 = vunpack.c.l.b16 %v329
  %v802 = vunpack.c.h.b16 %v329
  %v803 = vunpack.c.l.b16 %v330
  %v804 = vunpack.c.l.b16 %v331
  %v805 = vunpack.c.h.b16 %v331
  %v806 = vunpack.c.l.b16 %v332
  %v807 = vunpack.c.h.b16 %v332
  %v808 = vunpack.c.l.b16 %v333
  %v809 = vunpack.c.l.b16 %v334
  %v810 = vunpack.c.h.b16 %v334
  %v811 = vunpack.c.l.b16 %v335
  %v812 = vunpack.c.h.b16 %v335
  %v813 = vunpack.c.l.b16 %v336
  %v814 = vunpack.c.l.b16 %v337
  %v815 = vunpack.c.h.b16 %v337
  %v816 = vunpack.c.l.b16 %v338
  %v817 = vunpack.c.h.b16 %v338
  %v818 = vunpack.c.l.b16 %v339
  %v819 = vunpack.c.l.b16 %v340
  %v820 = vunpack.c.h.b16 %v340
  %v821 = vunpack.c.l.b16 %v341
  %v822 = vunpack.c.h.b16 %v341
  %v823 = vunpack.c.l.b16 %v342
  %v824 = vunpack.c.l.b16 %v343
  %v825 = vunpack.c.h.b16 %v343
  %v826 = vunpack.c.l.b16 %v344
  %v827 = vunpack.c.h.b16 %v344
  %v828 = vunpack.c.l.b16 %v345
  %v829 = vunpack.c.l.b16 %v346
  %v830 = vunpack.c.h.b16 %v346
  %v831 = vunpack.c.l.b16 %v347
  %v832 = vunpack.c.h.b16 %v347
  %v833 = vunpack.c.l.b16 %v348
  %v834 = vunpack.c.l.b16 %v349
  %v835 = vunpack.c.h.b16 %v349
  %v836 = vunpack.c.l.b16 %v350
  %v837 = vunpack.c.h.b16 %v350
  %v838 = vunpack.c.l.b16 %v351
  %v839 = vunpack.c.l.b16 %v352
  %v840 = vunpack.c.h.b16 %v352
  %v841 = vunpack.c.l.b16 %v353
  %v842 = vunpack.c.h.b16 %v353
  %v843 = vunpack.c.l.b16 %v354
  %v844 = vunpack.c.l.b16 %v355
  %v845 = vunpack.c.h.b16 %v355
  %v846 = vunpack.c.l.b16 %v356
  %v847 = vunpack.c.h.b16 %v356
  %v848 = vunpack.c.l.b16 %v357
  %v849 = vunpack.c.l.b16 %v358
  %v850 = vunpack.c.h.b16 %v358
  %v851 = vunpack.c.l.b16 %v359
  %v852 = vunpack.c.h.b16 %v359
  %v853 = vunpack.c.l.b16 %v360
  %v854 = vunpack.c.l.b16 %v361
  %v855 = vunpack.c.h.b16 %v361
  %v856 = vunpack.c.l.b16 %v362
  %v857 = vunpack.c.h.b16 %v362
  %v858 = vunpack.c.l.b16 %v363
  %v859 = vunpack.c.l.b16 %v364
  %v860 = vunpack.c.h.b16 %v364
  %v861 = vunpack.c.l.b16 %v365
  %v862 = vunpack.c.h.b16 %v365
  %v863 = vunpack.c.l.b16 %v366
  %v864 = vunpack.c.l.b16 %v367
  %v865 = vunpack.c.h.b16 %v367
  %v866 = vunpack.c.l.b16 %v368
  %v867 = vunpack.c.h.b16 %v368
  %v868 = vunpack.c.l.b16 %v369
  %v869 = vunpack.c.l.b16 %v370
  %v870 = vunpack.c.h.b16 %v370
  %v871 = vunpack.c.l.b16 %v371
  %v872 = vunpack.c.h.b16 %v371
  %v873 = vunpack.c.l.b16 %v372
  %v874 = vunpack.c.l.b16 %v373
  %v875 = vunpack.c.h.b16 %v373
  %v876 = vunpack.c.l.b16 %v374
  %v877 = vunpack.c.h.b16 %v374
  %v878 = vunpack.c.l.b16 %v375
  %v879 = vunpack.c.l.b16 %v376
  %v880 = vunpack.c.h.b16 %v376
  %v881 = vunpack.c.l.b16 %v377
  %v882 = vunpack.c.h.b16 %v377
  %v883 = vunpack.c.l.b16 %v378
  %v884 = vunpack.c.l.b16 %v379
  %v885 = vunpack.c.h.b16 %v379
  %v886 = vunpack.c.l.b16 %v380
  %v887 = vunpack.c.h.b16 %v380
  %v888 = vunpack.c.l.b16 %v381
  %v889 = vunpack.c.l.b16 %v382
  %v890 = vunpack.c.h.b16 %v382
  %v891 = vunpack.c.l.b16 %v383
  %v892 = vunpack.c.h.b16 %v383
  %v893 = vunpack.c.l.b16 %v384
  %v894 = vunpack.c.l.b16 %v385
  %v895 = vunpack.c.h.b16 %v385
  %v896 = vunpack.c.l.b16 %v386
  %v897 = vunpack.c.h.b16 %v386
  %v898 = vunpack.c.l.b16 %v387
  %v899 = vunpack.c.l.b16 %v388
  %v900 = vunpack.c.h.b16 %v388
  %v901 = vunpack.c.l.b16 %v389
  %v902 = vunpack.c.h.b16 %v389
  %v903 = vunpack.c.l.b16 %v390
  %v904 = vunpack.c.l.b16 %v391
  %v905 = vunpack.c.h.b16 %v391
  %v906 = vunpack.c.l.b16 %v392
  %v907 = vunpack.c.h.b16 %v392
  %v908 = vunpack.c.l.b16 %v393
  %v909 = vunpack.c.l.b16 %v394
  %v910 = vunpack.c.h.b16 %v394
  %v911 = vunpack.c.l.b16 %v395
  %v912 = vunpack.c.h.b16 %v395
  %v913 = vunpack.c.l.b16 %v396
  %v914 = vunpack.c.l.b16 %v397
  %v915 = vunpack.c.h.b16 %v397
  %v916 = vunpack.c.l.b16 %v398
  %v917 = vunpack.c.h.b16 %v398
  %v918 = vunpack.c.l.b16 %v399
  %v919 = vunpack.c.l.b16 %v400
  %v920 = vunpack.c.h.b16 %v400
  %v921 = vunpack.c.l.b16 %v401
  %v922 = vunpack.c.h.b16 %v401
  %v923 = vunpack.c.l.b16 %v402
  %v924 = vunpack.c.l.b16 %v403
  %v925 = vunpack.c.h.b16 %v403
  %v926 = vunpack.c.l.b16 %v404
  %v927 = vunpack.c.h.b16 %v404
  %v928 = vunpack.c.l.b16 %v405
  %v929 = vunpack.c.l.b16 %v406
  %v930 = vunpack.c.h.b16 %v406
  %v931 = vunpack.c.l.b16 %v407
  %v932 = vunpack.c.h.b16 %v407
  %v933 = vunpack.c.l.b16 %v408
  %v934 = vunpack.c.l.b16 %v409
  %v935 = vunpack.c.h.b16 %v409
  %v936 = vunpack.c.l.b16 %v410
  %v937 = vunpack.c.h.b16 %v410
  %v938 = vunpack.c.l.b16 %v411
  %v939 = vunpack.c.l.b16 %v412
  %v940 = vunpack.c.h.b16 %v412
  %v941 = vunpack.c.l.b16 %v413
  %v942 = vunpack.c.h.b16 %v413
  %v943 = vunpack.c.l.b16 %v414
  %v944 = vunpack.c.l.b16 %v415
  %v945 = vunpack.c.h.b16 %v415
  %v946 = vunpack.c.l.b16 %v416
  %v947 = vunpack.c.h.b16 %v416
  %v948 = vunpack.c.l.b16 %v417
  %v949 = vunpack.c.l.b16 %v418
  %v950 = vunpack.c.h.b16 %v418
  %v951 = vunpack.c.l.b16 %v419
  %v952 = vunpack.c.h.b16 %v419
  %v953 = vunpack.c.l.b16 %v420
  %v954 = vunpack.c.l.b16 %v421
  %v955 = vunpack.c.h.b16 %v421
  %v956 = vunpack.c.l.b16 %v422
  %v957 = vunpack.c.h.b16 %v422
  %v958 = vunpack.c.l.b16 %v423
  %v959 = vunpack.c.l.b16 %v424
  %v960 = vunpack.c.h.b16 %v424
  %v961 = vunpack.c.l.b16 %v425
  %v962 = vunpack.c.h.b16 %v425
  %v963 = vunpack.c.l.b16 %v426
  %v964 = vunpack.c.l.b16 %v427
  %v965 = vunpack.c.h.b16 %v427
  %v966 = vunpack.c.l.b16 %v428
  %v967 = vunpack.c.h.b16 %v428
  %v968 = vunpack.c.l.b16 %v429
  %v969 = vunpack.c.l.b16 %v430
  %v970 = vunpack.c.h.b16 %v430
  %v971 = vunpack.c.l.b16 %v431
  %v972 = vunpack.c.h.b16 %v431
  %v973 = vunpack.c.l.b16 %v432
  %v974 = vunpack.c.l.b16 %v433
  %v975 = vunpack.c.h.b16 %v433
  %v976 = vunpack.c.l.b16 %v434
  %v977 = vunpack.c.h.b16 %v434
  %v978 = vunpack.c.l.b16 %v435
  %v979 = vunpack.c.l.b16 %v436
  %v980 = vunpack.c.h.b16 %v436
  %v981 = vunpack.c.l.b16 %v437
  %v982 = vunpack.c.h.b16 %v437
  %v983 = vunpack.c.l.b16 %v438
  %v984 = vunpack.c.l.b16 %v439
  %v985 = vunpack.c.h.b16 %v439
  %v986 = vunpack.c.l.b16 %v440
  %v987 = vunpack.c.h.b16 %v440
  %v988 = vunpack.c.l.b16 %v441
  %v989 = vunpack.c.l.b16 %v442
  %v990 = vunpack.c.h.b16 %v442
  %v991 = vunpack.c.l.b16 %v443
  %v992 = vunpack.c.h.b16 %v443
  %v993 = vunpack.c.l.b16 %v444
  %v994 = vunpack.c.l.b16 %v445
  %v995 = vunpack.c.h.b16 %v445
  %v996 = vunpack.c.l.b16 %v446
  %v997 = vunpack.c.h.b16 %v446
  %v998 = vunpack.c.l.b16 %v447
  %v999 = vunpack.c.l.b16 %v448
  %v1000 = vunpack.c.h.b16 %v448
  %v1001 = vunpack.c.l.b16 %v449
  %v1002 = vunpack.c.h.b16 %v449
  %v1003 = vunpack.c.l.b16 %v450
  %v1004 = vunpack.c.l.b16 %v451
  %v1005 = vunpack.c.h.b16 %v451
  %v1006 = vunpack.c.l.b16 %v452
  %v1007 = vunpack.c.h.b16 %v452
  %v1008 = vunpack.c.l.b16 %v453
  %v1009 = vunpack.c.l.b16 %v454
  %v1010 = vunpack.c.h.b16 %v454
  %v1011 = vunpack.c.l.b16 %v455
  %v1012 = vunpack.c.h.b16 %v455
  %v1013 = vunpack.c.l.b16 %v456
  %v1014 = vunpack.c.l.b16 %v457
  %v1015 = vunpack.c.h.b16 %v457
  %v1016 = vunpack.c.l.b16 %v458
  %v1017 = vunpack.c.h.b16 %v458
  %v1018 = vunpack.c.l.b16 %v459
  %v1019 = vunpack.c.l.b16 %v460
  %v1020 = vunpack.c.h.b16 %v460
  %v1021 = vunpack.c.l.b16 %v461
  %v1022 = vunpack.c.h.b16 %v461
  %v1023 = vunpack.c.l.b16 %v462
  %v1024 = vunpack.c.l.b16 %v463
  %v1025 = vunpack.c.h.b16 %v463
  %v1026 = vunpack.c.l.b16 %v464
  %v1027 = vunpack.c.h.b16 %v464
  %v1028 = vunpack.c.l.b16 %v465
  %v1029 = vunpack.c.l.b16 %v466
  %v1030 = vunpack.c.h.b16 %v466
  %v1031 = vunpack.c.l.b16 %v467
  %v1032 = vunpack.c.h.b16 %v467
  %v1033 = vunpack.c.l.b16 %v468
  %v1034 = vunpack.c.l.b16 %v469
  %v1035 = vunpack.c.h.b16 %v469
  %v1036 = vunpack.c.l.b16 %v470
  %v1037 = vunpack.c.h.b16 %v470
  %v1038 = vunpack.c.l.b16 %v471
  %v1039 = vunpack.c.l.b16 %v472
  %v1040 = vunpack.c.h.b16 %v472
  %v1041 = vunpack.c.l.b16 %v473
  %v1042 = vunpack.c.h.b16 %v473
  %v1043 = vunpack.c.l.b16 %v474
  %v1044 = vunpack.c.l.b16 %v475
  %v1045 = vunpack.c.h.b16 %v475
  %v1046 = vunpack.c.l.b16 %v476
  %v1047 = vunpack.c.h.b16 %v476
  %v1048 = vunpack.c.l.b16 %v477
  %v1049 = vunpack.c.l.b16 %v478
  %v1050 = vunpack.c.h.b16 %v478
  %v1051 = vunpack.c.l.b16 %v479
  %v1052 = vunpack.c.h.b16 %v479
  %v1053 = vunpack.c.l.b16 %v480
  %v1054 = vunpack.c.l.b16 %v481
  %v1055 = vunpack.c.h.b16 %v481
  %v1056 = vunpack.c.l.b16 %v482
  %v1057 = vunpack.c.h.b16 %v482
  %v1058 = vunpack.c.l.b16 %v483
  %v1059 = vunpack.c.l.b16 %v484
  %v1060 = vunpack.c.h.b16 %v484
  %v1061 = vunpack.c.l.b16 %v485
  %v1062 = vunpack.c.h.b16 %v485
  %v1063 = vunpack.c.l.b16 %v486
  %v1064 = vunpack.c.l.b16 %v487
  %v1065 = vunpack.c.h.b16 %v487
  %v1066 = vunpack.c.l.b16 %v488
  %v1067 = vunpack.c.h.b16 %v488
  %v1068 = vunpack.c.l.b16 %v489
  %v1069 = vunpack.c.l.b16 %v490
  %v1070 = vunpack.c.h.b16 %v490
  %v1071 = vunpack.c.l.b16 %v491
  %v1072 = vunpack.c.h.b16 %v491
  %v1073 = vunpack.c.l.b16 %v492
  %v1074 = vunpack.c.l.b16 %v493
  %v1075 = vunpack.c.h.b16 %v493
  %v1076 = vunpack.c.l.b16 %v494
  %v1077 = vunpack.c.h.b16 %v494
  %v1078 = vunpack.c.l.b16 %v495
  %v1079 = vunpack.c.l.b16 %v496
  %v1080 = vunpack.c.h.b16 %v496
  %v1081 = vunpack.c.l.b16 %v497
  %v1082 = vunpack.c.h.b16 %v497
  %v1083 = vunpack.c.l.b16 %v498
  %v1084 = vunpack.c.l.b16 %v499
  %v1085 = vunpack.c.h.b16 %v499
  %v1086 = vunpack.c.l.b16 %v500
  %v1087 = vunpack.c.h.b16 %v500
  %v1088 = vunpack.c.l.b16 %v501
  %v1089 = vunpack.c.l.b16 %v502
  %v1090 = vunpack.c.h.b16 %v502
  %v1091 = vunpack.c.l.b16 %v503
  %v1092 = vunpack.c.h.b16 %v503
  %v1093 = vunpack.c.l.b16 %v504
  %v1094 = vunpack.c.l.b16 %v505
  %v1095 = vunpack.c.h.b16 %v505
  %v1096 = vunpack.c.l.b16 %v506
  %v1097 = vunpack.c.h.b16 %v506
  %v1098 = vunpack.c.l.b16 %v507
  %v1099 = vunpack.c.l.b16 %v508
  %v1100 = vunpack.c.h.b16 %v508
  %v1101 = vunpack.c.l.b16 %v509
  %v1102 = vunpack.c.h.b16 %v509
  %v1103 = vunpack.c.l.b16 %v510
  %v1104 = vunpack.c.l.b16 %v511
  %v1105 = vunpack.c.h.b16 %v511
  %v1106 = vunpack.c.l.b16 %v512
  %v1107 = vunpack.c.h.b16 %v512
  %v1108 = vunpack.c.l.b16 %v513
  %v1109 = vunpack.c.l.b16 %v514
  %v1110 = vunpack.c.h.b16 %v514
  %v1111 = vunpack.c.l.b16 %v515
  %v1112 = vunpack.c.h.b16 %v515
  %v1113 = vunpack.c.l.b16 %v516
  %v1114 = vunpack.c.l.b16 %v517
  %v1115 = vunpack.c.h.b16 %v517
  %v1116 = vunpack.c.l.b16 %v518
  %v1117 = vunpack.c.h.b16 %v518
  %v1118 = vunpack.c.l.b16 %v519
  %v1119 = vunpack.c.l.b16 %v520
  %v1120 = vunpack.c.h.b16 %v520
  %v1121 = vunpack.c.l.b16 %v521
  %v1122 = vunpack.c.h.b16 %v521
  %v1123 = vunpack.c.l.b16 %v522
  %v1124 = vunpack.c.l.b16 %v523
  %v1125 = vunpack.c.h.b16 %v523
  %v1126 = vunpack.c.l.b16 %v524
  %v1127 = vunpack.c.h.b16 %v524
  %v1128 = vunpack.c.l.b16 %v525
  %v1129 = vpack.c.b16 %v774, %v769
  %v1130 = vpack.c.b16 %v775, %v770
  %v1131 = vpack.c.b16 %v776, %v771
  %v1132 = vpack.c.b16 %v777, %v772
  %v1133 = vpack.c.b16 %v778, %v773
  %v1134 = vpack.c.b16 %v784, %v779
  %v1135 = vpack.c.b16 %v785, %v780
  %v1136 = vpack.c.b16 %v786, %v781
  %v1137 = vpack.c.b16 %v787, %v782
  %v1138 = vpack.c.b16 %v788, %v783
  %v1139 = vpack.c.b16 %v794, %v789
  %v1140 = vpack.c.b16 %v795, %v790
  %v1141 = vpack.c.b16 %v796, %v791
  %v1142 = vpack.c.b16 %v797, %v792
  %v1143 = vpack.c.b16 %v798, %v793
  %v1144 = vpack.c.b16 %v804, %v799
  %v1145 = vpack.c.b16 %v805, %v800
  %v1146 = vpack.c.b16 %v806, %v801
  %v1147 = vpack.c.b16 %v807, %v802
  %v1148 = vpack.c.b16 %v808, %v803
  %v1149 = vpack.c.b16 %v814, %v809
  %v1150 = vpack.c.b16 %v815, %v810
  %v1151 = vpack.c.b16 %v816, %v811
  %v1152 = vpack.c.b16 %v817, %v812
  %v1153 = vpack.c.b16 %v818, %v813
  %v1154 = vpack.c.b16 %v824, %v819
  %v1155 = vpack.c.b16 %v825, %v820
  %v1156 = vpack.c.b16 %v826, %v821
  %v1157 = vpack.c.b16 %v827, %v822
  %v1158 = vpack.c.b16 %v828, %v823
  %v1159 = vpack.c.b16 %v834, %v829
  %v1160 = vpack.c.b16 %v835, %v830
  %v1161 = vpack.c.b16 %v836, %v831
  %v1162 = vpack.c.b16 %v837, %v832
  %v1163 = vpack.c.b16 %v838, %v833
  %v1164 = vpack.c.b16 %v844, %v839
  %v1165 = vpack.c.b16 %v845, %v840
  %v1166 = vpack.c.b16 %v846, %v841
  %v1167 = vpack.c.b16 %v847, %v842
  %v1168 = vpack.c.b16 %v848, %v843
  %v1169 = vpack.c.b16 %v854, %v849
  %v1170 = vpack.c.b16 %v855, %v850
  %v1171 = vpack.c.b16 %v856, %v851
  %v1172 = vpack.c.b16 %v857, %v852
  %v1173 = vpack.c.b16 %v858, %v853
  %v1174 = vpack.c.b16 %v864, %v859
  %v1175 = vpack.c.b16 %v865, %v860
  %v1176 = vpack.c.b16 %v866, %v861
  %v1177 = vpack.c.b16 %v867, %v862
  %v1178 = vpack.c.b16 %v868, %v863
  %v1179 = vpack.c.b16 %v874, %v869
  %v1180 = vpack.c.b16 %v875, %v870
  %v1181 = vpack.c.b16 %v876, %v871
  %v1182 = vpack.c.b16 %v877, %v872
  %v1183 = vpack.c.b16 %v878, %v873
  %v1184 = vpack.c.b16 %v884, %v879
  %v1185 = vpack.c.b16 %v885, %v880
  %v1186 = vpack.c.b16 %v886, %v881
  %v1187 = vpack.c.b16 %v887, %v882
  %v1188 = vpack.c.b16 %v888, %v883
  %v1189 = vpack.c.b16 %v894, %v889
  %v1190 = vpack.c.b16 %v895, %v890
  %v1191 = vpack.c.b16 %v896, %v891
  %v1192 = vpack.c.b16 %v897, %v892
  %v1193 = vpack.c.b16 %v898, %v893
  %v1194 = vpack.c.b16 %v904, %v899
  %v1195 = vpack.c.b16 %v905, %v900
  %v1196 = vpack.c.b16 %v906, %v901
  %v1197 = vpack.c.b16 %v907, %v902
  %v1198 = vpack.c.b16 %v908, %v903
  %v1199 = vpack.c.b16 %v914, %v909
  %v1200 = vpack.c.b16 %v915, %v910
  %v1201 = vpack.c.b16 %v916, %v911
  %v1202 = vpack.c.b16 %v917, %v912
  %v1203 = vpack.c.b16 %v918, %v913
  %v1204 = vpack.c.b16 %v924, %v919
  %v1205 = vpack.c.b16 %v925, %v920
  %v1206 = vpack.c.b16 %v926, %v921
  %v1207 = vpack.c.b16 %v927, %v922
  %v1208 = vpack.c.b16 %v928, %v923
  %v1209 = vpack.c.b16 %v934, %v929
  %v1210 = vpack.c.b16 %v935, %v930
  %v1211 = vpack.c.b16 %v936, %v931
  %v1212 = vpack.c.b16 %v937, %v932
  %v1213 = vpack.c.b16 %v938, %v933
  %v1214 = vpack.c.b16 %v944, %v939
  %v1215 = vpack.c.b16 %v945, %v940
  %v1216 = vpack.c.b16 %v946, %v941
  %v1217 = vpack.c.b16 %v947, %v942
  %v1218 = vpack.c.b16 %v948, %v943
  %v1219 = vpack.c.b16 %v954, %v949
  %v1220 = vpack.c.b16 %v955, %v950
  %v1221 = vpack.c.b16 %v956, %v951
  %v1222 = vpack.c.b16 %v957, %v952
  %v1223 = vpack.c.b16 %v958, %v953
  %v1224 = vpack.c.b16 %v964, %v959
  %v1225 = vpack.c.b16 %v965, %v960
  %v1226 = vpack.c.b16 %v966, %v961
  %v1227 = vpack.c.b16 %v967, %v962
  %v1228 = vpack.c.b16 %v968, %v963
  %v1229 = vpack.c.b16 %v974, %v969
  %v1230 = vpack.c.b16 %v975, %v970
  %v1231 = vpack.c.b16 %v976, %v971
  %v1232 = vpack.c.b16 %v977, %v972
  %v1233 = vpack.c.b16 %v978, %v973
  %v1234 = vpack.c.b16 %v984, %v979
  %v1235 = vpack.c.b16 %v985, %v980
  %v1236 = vpack.c.b16 %v986, %v981
  %v1237 = vpack.c.b16 %v987, %v982
  %v1238 = vpack.c.b16 %v988, %v983
  %v1239 = vpack.c.b16 %v994, %v989
  %v1240 = vpack.c.b16 %v995, %v990
  %v1241 = vpack.c.b16 %v996, %v991
  %v1242 = vpack.c.b16 %v997, %v992
  %v1243 = vpack.c.b16 %v998, %v993
  %v1244 = vpack.c.b16 %v1004, %v999
  %v1245 = vpack.c.b16 %v1005, %v1000
  %v1246 = vpack.c.b16 %v1006, %v1001
  %v1247 = vpack.c.b16 %v1007, %v1002
  %v1248 = vpack.c.b16 %v1008, %v1003
  %v1249 = vpack.c.b16 %v1014, %v1009
  %v1250 = vpack.c.b16 %v1015, %v1010
  %v1251 = vpack.c.b16 %v1016, %v1011
  %v1252 = vpack.c.b16 %v1017, %v1012
  %v1253 = vpack.c.b16 %v1018, %v1013
  %v1254 = vpack.c.b16 %v1024, %v1019
  %v1255 = vpack.c.b16 %v1025, %v1020
  %v1256 = vpack.c.b16 %v1026, %v1021
  %v1257 = vpack.c.b16 %v1027, %v1022
  %v1258 = vpack.c.b16 %v1028, %v1023
  %v1259 = vpack.c.b16 %v1034, %v1029
  %v1260 = vpack.c.b16 %v1035, %v1030
  %v1261 = vpack.c.b16 %v1036, %v1031
  %v1262 = vpack.c.b16 %v1037, %v1032
  %v1263 = vpack.c.b16 %v1038, %v1033
  %v1264 = vpack.c.b16 %v1044, %v1039
  %v1265 = vpack.c.b16 %v1045, %v1040
  %v1266 = vpack.c.b16 %v1046, %v1041
  %v1267 = vpack.c.b16 %v1047, %v1042
  %v1268 = vpack.c.b16 %v1048, %v1043
  %v1269 = vpack.c.b16 %v1054, %v1049
  %v1270 = vpack.c.b16 %v1055, %v1050
  %v1271 = vpack.c.b16 %v1056, %v1051
  %v1272 = vpack.c.b16 %v1057, %v1052
  %v1273 = vpack.c.b16 %v1058, %v1053
  %v1274 = vpack.c.b16 %v1064, %v1059
  %v1275 = vpack.c.b16 %v1065, %v1060
  %v1276 = vpack.c.b16 %v1066, %v1061
  %v1277 = vpack.c.b16 %v1067, %v1062
  %v1278 = vpack.c.b16 %v1068, %v1063
  %v1279 = vpack.c.b16 %v1074, %v1069
  %v1280 = vpack.c.b16 %v1075, %v1070
  %v1281 = vpack.c.b16 %v1076, %v1071
  %v1282 = vpack.c.b16 %v1077, %v1072
  %v1283 = vpack.c.b16 %v1078, %v1073
  %v1284 = vpack.c.b16 %v1084, %v1079
  %v1285 = vpack.c.b16 %v1085, %v1080
  %v1286 = vpack.c.b16 %v1086, %v1081
  %v1287 = vpack.c.b16 %v1087, %v1082
  %v1288 = vpack.c.b16 %v1088, %v1083
  %v1289 = vpack.c.b16 %v1094, %v1089
  %v1290 = vpack.c.b16 %v1095, %v1090
  %v1291 = vpack.c.b16 %v1096, %v1091
  %v1292 = vpack.c.b16 %v1097, %v1092
  %v1293 = vpack.c.b16 %v1098, %v1093
  %v1294 = vpack.c.b16 %v1104, %v1099
  %v1295 = vpack.c.b16 %v1105, %v1100
  %v1296 = vpack.c.b16 %v1106, %v1101
  %v1297 = vpack.c.b16 %v1107, %v1102
  %v1298 = vpack.c.b16 %v1108, %v1103
  %v1299 = vpack.c.b16 %v1114, %v1109
  %v1300 = vpack.c.b16 %v1115, %v1110
  %v1301 = vpack.c.b16 %v1116, %v1111
  %v1302 = vpack.c.b16 %v1117, %v1112
  %v1303 = vpack.c.b16 %v1118, %v1113
  %v1304 = vpack.c.b16 %v1124, %v1119
  %v1305 = vpack.c.b16 %v1125, %v1120
  %v1306 = vpack.c.b16 %v1126, %v1121
  %v1307 = vpack.c.b16 %v1127, %v1122
  %v1308 = vpack.c.b16 %v1128, %v1123
  %vm1489 = vcmask 523264
  %v1491 = vsel %vm1489, %v309, 0
  %1493 = vmatprep.subr.bf16.mxu0 %v1130
  %1494 = vmatpush1.bf16.msra.mxu0 %v1129
  %1495 = vmatprep.subr.bf16.mxu0 %v1135
  %1496 = vmatpush1.bf16.msra.mxu0 %v1134
  %1497 = vmatprep.subr.bf16.mxu0 %v1140
  %1498 = vmatpush1.bf16.msra.mxu0 %v1139
  %1499 = vmatprep.subr.bf16.mxu0 %v1145
  %1500 = vmatpush1.bf16.msra.mxu0 %v1144
  %1501 = vmatprep.subr.bf16.mxu0 %v1150
  %1502 = vmatpush1.bf16.msra.mxu0 %v1149
  %1503 = vmatprep.subr.bf16.mxu0 %v1155
  %1504 = vmatpush1.bf16.msra.mxu0 %v1154
  %1505 = vmatprep.subr.bf16.mxu0 %v1160
  %1506 = vmatpush1.bf16.msra.mxu0 %v1159
  %1507 = vmatprep.subr.bf16.mxu0 %v1165
  %1508 = vmatpush1.bf16.msra.mxu0 %v1164
  %1509 = vmatprep.subr.bf16.mxu0 %v1170
  %1510 = vmatpush1.bf16.msra.mxu0 %v1169
  %1511 = vmatprep.subr.bf16.mxu0 %v1175
  %1512 = vmatpush1.bf16.msra.mxu0 %v1174
  %1513 = vmatprep.subr.bf16.mxu0 %v1180
  %1514 = vmatpush1.bf16.msra.mxu0 %v1179
  %1515 = vmatprep.subr.bf16.mxu0 %v1185
  %1516 = vmatpush1.bf16.msra.mxu0 %v1184
  %1517 = vmatprep.subr.bf16.mxu0 %v1190
  %1518 = vmatpush1.bf16.msra.mxu0 %v1189
  %1519 = vmatprep.subr.bf16.mxu0 %v1195
  %1520 = vmatpush1.bf16.msra.mxu0 %v1194
  %1521 = vmatprep.subr.bf16.mxu0 %v1200
  %1522 = vmatpush1.bf16.msra.mxu0 %v1199
  %1523 = vmatprep.subr.bf16.mxu0 %v1205
  %1524 = vmatpush1.bf16.msra.mxu0 %v1204
  %1525 = vmatprep.mubr.bf16.mxu0 %v306
  %1526 = vmatmul.mubr.bf16.gmra.mrb[0].mxu0 %v305
  %v1527 = vpop.f32.mrb[0].mxu0
  %v1528 = vadd.f32 %v531, %v1527
  %v1529 = vpop.f32.mrb[0].mxu0
  %v1530 = vadd.f32 %v535, %v1529
  %v1531 = vpop.f32.mrb[0].mxu0
  %v1532 = vpop.f32.mrb[0].mxu0
  %1533 = vdwg.mxu0
  %1534 = vmatprep.subr.bf16.mxu0 %v1210
  %1535 = vmatpush1.bf16.msra.mxu0 %v1209
  %1536 = vmatprep.subr.bf16.mxu0 %v1215
  %1537 = vmatpush1.bf16.msra.mxu0 %v1214
  %1538 = vmatprep.subr.bf16.mxu0 %v1220
  %1539 = vmatpush1.bf16.msra.mxu0 %v1219
  %1540 = vmatprep.subr.bf16.mxu0 %v1225
  %1541 = vmatpush1.bf16.msra.mxu0 %v1224
  %1542 = vmatprep.subr.bf16.mxu0 %v1230
  %1543 = vmatpush1.bf16.msra.mxu0 %v1229
  %1544 = vmatprep.subr.bf16.mxu0 %v1235
  %1545 = vmatpush1.bf16.msra.mxu0 %v1234
  %1546 = vmatprep.subr.bf16.mxu0 %v1240
  %1547 = vmatpush1.bf16.msra.mxu0 %v1239
  %1548 = vmatprep.subr.bf16.mxu0 %v1245
  %1549 = vmatpush1.bf16.msra.mxu0 %v1244
  %1550 = vmatprep.subr.bf16.mxu0 %v1250
  %1551 = vmatpush1.bf16.msra.mxu0 %v1249
  %1552 = vmatprep.subr.bf16.mxu0 %v1255
  %1553 = vmatpush1.bf16.msra.mxu0 %v1254
  %1554 = vmatprep.subr.bf16.mxu0 %v1260
  %1555 = vmatpush1.bf16.msra.mxu0 %v1259
  %1556 = vmatprep.subr.bf16.mxu0 %v1265
  %1557 = vmatpush1.bf16.msra.mxu0 %v1264
  %1558 = vmatprep.subr.bf16.mxu0 %v1270
  %1559 = vmatpush1.bf16.msra.mxu0 %v1269
  %1560 = vmatprep.subr.bf16.mxu0 %v1275
  %1561 = vmatpush1.bf16.msra.mxu0 %v1274
  %1562 = vmatprep.subr.bf16.mxu0 %v1280
  %1563 = vmatpush1.bf16.msra.mxu0 %v1279
  %1564 = vmatprep.subr.bf16.mxu0 %v1285
  %1565 = vmatpush1.bf16.msra.mxu0 %v1284
  %1566 = vmatprep.mubr.bf16.mxu0 %v308
  %1567 = vmatmul.mubr.bf16.gmra.mrb[0].mxu0 %v307
  %v1568 = vpop.f32.mrb[0].mxu0
  %v1569 = vadd.f32 %v1528, %v1568
  %v1570 = vpop.f32.mrb[0].mxu0
  %v1571 = vadd.f32 %v1530, %v1570
  %v1572 = vpop.f32.mrb[0].mxu0
  %v1573 = vpop.f32.mrb[0].mxu0
  %1574 = vdwg.mxu0
  %1575 = vmatprep.subr.bf16.mxu0 %v1290
  %1576 = vmatpush1.bf16.msra.mxu0 %v1289
  %1577 = vmatprep.subr.bf16.mxu0 %v1295
  %1578 = vmatpush1.bf16.msra.mxu0 %v1294
  %1579 = vmatprep.subr.bf16.mxu0 %v1300
  %1580 = vmatpush1.bf16.msra.mxu0 %v1299
  %1581 = vmatprep.subr.bf16.mxu0 %v1305
  %1582 = vmatpush1.bf16.msra.mxu0 %v1304
  %1583 = vmatprep.subr.bf16.mxu0 0
  %1584 = vmatpush1.bf16.msra.mxu0 0
  %1585 = vmatprep.subr.bf16.mxu0 0
  %1586 = vmatpush1.bf16.msra.mxu0 0
  %1587 = vmatprep.subr.bf16.mxu0 0
  %1588 = vmatpush1.bf16.msra.mxu0 0
  %1589 = vmatprep.subr.bf16.mxu0 0
  %1590 = vmatpush1.bf16.msra.mxu0 0
  %1591 = vmatprep.subr.bf16.mxu0 0
  %1592 = vmatpush1.bf16.msra.mxu0 0
  %1593 = vmatprep.subr.bf16.mxu0 0
  %1594 = vmatpush1.bf16.msra.mxu0 0
  %1595 = vmatprep.subr.bf16.mxu0 0
  %1596 = vmatpush1.bf16.msra.mxu0 0
  %1597 = vmatprep.subr.bf16.mxu0 0
  %1598 = vmatpush1.bf16.msra.mxu0 0
  %1599 = vmatprep.subr.bf16.mxu0 0
  %1600 = vmatpush1.bf16.msra.mxu0 0
  %1601 = vmatprep.subr.bf16.mxu0 0
  %1602 = vmatpush1.bf16.msra.mxu0 0
  %1603 = vmatprep.subr.bf16.mxu0 0
  %1604 = vmatpush1.bf16.msra.mxu0 0
  %1605 = vmatprep.subr.bf16.mxu0 0
  %1606 = vmatpush1.bf16.msra.mxu0 0
  %1607 = vmatprep.mubr.bf16.mxu0 0
  %1608 = vmatmul.mubr.bf16.gmra.mrb[0].mxu0 %v1491
  %v1609 = vpop.f32.mrb[0].mxu0
  %v1610 = vadd.f32 %v1569, %v1609
  %v1611 = vpop.f32.mrb[0].mxu0
  %v1612 = vadd.f32 %v1571, %v1611
  %v1613 = vpop.f32.mrb[0].mxu0
  %v1614 = vpop.f32.mrb[0].mxu0
  %1615 = vdwg.mxu0
  %1616 = vmatprep.subr.bf16.mxu0 %v1132
  %1617 = vmatpush1.bf16.msra.mxu0 %v1131
  %1618 = vmatprep.subr.bf16.mxu0 %v1137
  %1619 = vmatpush1.bf16.msra.mxu0 %v1136
  %1620 = vmatprep.subr.bf16.mxu0 %v1142
  %1621 = vmatpush1.bf16.msra.mxu0 %v1141
  %1622 = vmatprep.subr.bf16.mxu0 %v1147
  %1623 = vmatpush1.bf16.msra.mxu0 %v1146
  %1624 = vmatprep.subr.bf16.mxu0 %v1152
  %1625 = vmatpush1.bf16.msra.mxu0 %v1151
  %1626 = vmatprep.subr.bf16.mxu0 %v1157
  %1627 = vmatpush1.bf16.msra.mxu0 %v1156
  %1628 = vmatprep.subr.bf16.mxu0 %v1162
  %1629 = vmatpush1.bf16.msra.mxu0 %v1161
  %1630 = vmatprep.subr.bf16.mxu0 %v1167
  %1631 = vmatpush1.bf16.msra.mxu0 %v1166
  %1632 = vmatprep.subr.bf16.mxu0 %v1172
  %1633 = vmatpush1.bf16.msra.mxu0 %v1171
  %1634 = vmatprep.subr.bf16.mxu0 %v1177
  %1635 = vmatpush1.bf16.msra.mxu0 %v1176
  %1636 = vmatprep.subr.bf16.mxu0 %v1182
  %1637 = vmatpush1.bf16.msra.mxu0 %v1181
  %1638 = vmatprep.subr.bf16.mxu0 %v1187
  %1639 = vmatpush1.bf16.msra.mxu0 %v1186
  %1640 = vmatprep.subr.bf16.mxu0 %v1192
  %1641 = vmatpush1.bf16.msra.mxu0 %v1191
  %1642 = vmatprep.subr.bf16.mxu0 %v1197
  %1643 = vmatpush1.bf16.msra.mxu0 %v1196
  %1644 = vmatprep.subr.bf16.mxu0 %v1202
  %1645 = vmatpush1.bf16.msra.mxu0 %v1201
  %1646 = vmatprep.subr.bf16.mxu0 %v1207
  %1647 = vmatpush1.bf16.msra.mxu0 %v1206
  %1648 = vmatprep.mubr.bf16.mxu0 %v306
  %1649 = vmatmul.mubr.bf16.gmra.mrb[0].mxu0 %v305
  %v1650 = vpop.f32.mrb[0].mxu0
  %v1651 = vadd.f32 %v539, %v1650
  %v1652 = vpop.f32.mrb[0].mxu0
  %v1653 = vadd.f32 %v543, %v1652
  %v1654 = vpop.f32.mrb[0].mxu0
  %v1655 = vpop.f32.mrb[0].mxu0
  %1656 = vdwg.mxu0
  %1657 = vmatprep.subr.bf16.mxu0 %v1212
  %1658 = vmatpush1.bf16.msra.mxu0 %v1211
  %1659 = vmatprep.subr.bf16.mxu0 %v1217
  %1660 = vmatpush1.bf16.msra.mxu0 %v1216
  %1661 = vmatprep.subr.bf16.mxu0 %v1222
  %1662 = vmatpush1.bf16.msra.mxu0 %v1221
  %1663 = vmatprep.subr.bf16.mxu0 %v1227
  %1664 = vmatpush1.bf16.msra.mxu0 %v1226
  %1665 = vmatprep.subr.bf16.mxu0 %v1232
  %1666 = vmatpush1.bf16.msra.mxu0 %v1231
  %1667 = vmatprep.subr.bf16.mxu0 %v1237
  %1668 = vmatpush1.bf16.msra.mxu0 %v1236
  %1669 = vmatprep.subr.bf16.mxu0 %v1242
  %1670 = vmatpush1.bf16.msra.mxu0 %v1241
  %1671 = vmatprep.subr.bf16.mxu0 %v1247
  %1672 = vmatpush1.bf16.msra.mxu0 %v1246
  %1673 = vmatprep.subr.bf16.mxu0 %v1252
  %1674 = vmatpush1.bf16.msra.mxu0 %v1251
  %1675 = vmatprep.subr.bf16.mxu0 %v1257
  %1676 = vmatpush1.bf16.msra.mxu0 %v1256
  %1677 = vmatprep.subr.bf16.mxu0 %v1262
  %1678 = vmatpush1.bf16.msra.mxu0 %v1261
  %1679 = vmatprep.subr.bf16.mxu0 %v1267
  %1680 = vmatpush1.bf16.msra.mxu0 %v1266
  %1681 = vmatprep.subr.bf16.mxu0 %v1272
  %1682 = vmatpush1.bf16.msra.mxu0 %v1271
  %1683 = vmatprep.subr.bf16.mxu0 %v1277
  %1684 = vmatpush1.bf16.msra.mxu0 %v1276
  %1685 = vmatprep.subr.bf16.mxu0 %v1282
  %1686 = vmatpush1.bf16.msra.mxu0 %v1281
  %1687 = vmatprep.subr.bf16.mxu0 %v1287
  %1688 = vmatpush1.bf16.msra.mxu0 %v1286
  %1689 = vmatprep.mubr.bf16.mxu0 %v308
  %1690 = vmatmul.mubr.bf16.gmra.mrb[0].mxu0 %v307
  %v1691 = vpop.f32.mrb[0].mxu0
  %v1692 = vadd.f32 %v1651, %v1691
  %v1693 = vpop.f32.mrb[0].mxu0
  %v1694 = vadd.f32 %v1653, %v1693
  %v1695 = vpop.f32.mrb[0].mxu0
  %v1696 = vpop.f32.mrb[0].mxu0
  %1697 = vdwg.mxu0
  %1698 = vmatprep.subr.bf16.mxu0 %v1292
  %1699 = vmatpush1.bf16.msra.mxu0 %v1291
  %1700 = vmatprep.subr.bf16.mxu0 %v1297
  %1701 = vmatpush1.bf16.msra.mxu0 %v1296
  %1702 = vmatprep.subr.bf16.mxu0 %v1302
  %1703 = vmatpush1.bf16.msra.mxu0 %v1301
  %1704 = vmatprep.subr.bf16.mxu0 %v1307
  %1705 = vmatpush1.bf16.msra.mxu0 %v1306
  %1706 = vmatprep.subr.bf16.mxu0 0
  %1707 = vmatpush1.bf16.msra.mxu0 0
  %1708 = vmatprep.subr.bf16.mxu0 0
  %1709 = vmatpush1.bf16.msra.mxu0 0
  %1710 = vmatprep.subr.bf16.mxu0 0
  %1711 = vmatpush1.bf16.msra.mxu0 0
  %1712 = vmatprep.subr.bf16.mxu0 0
  %1713 = vmatpush1.bf16.msra.mxu0 0
  %1714 = vmatprep.subr.bf16.mxu0 0
  %1715 = vmatpush1.bf16.msra.mxu0 0
  %1716 = vmatprep.subr.bf16.mxu0 0
  %1717 = vmatpush1.bf16.msra.mxu0 0
  %1718 = vmatprep.subr.bf16.mxu0 0
  %1719 = vmatpush1.bf16.msra.mxu0 0
  %1720 = vmatprep.subr.bf16.mxu0 0
  %1721 = vmatpush1.bf16.msra.mxu0 0
  %1722 = vmatprep.subr.bf16.mxu0 0
  %1723 = vmatpush1.bf16.msra.mxu0 0
  %1724 = vmatprep.subr.bf16.mxu0 0
  %1725 = vmatpush1.bf16.msra.mxu0 0
  %1726 = vmatprep.subr.bf16.mxu0 0
  %1727 = vmatpush1.bf16.msra.mxu0 0
  %1728 = vmatprep.subr.bf16.mxu0 0
  %1729 = vmatpush1.bf16.msra.mxu0 0
  %1730 = vmatprep.mubr.bf16.mxu0 0
  %1731 = vmatmul.mubr.bf16.gmra.mrb[0].mxu0 %v1491
  %v1732 = vpop.f32.mrb[0].mxu0
  %v1733 = vadd.f32 %v1692, %v1732
  %v1734 = vpop.f32.mrb[0].mxu0
  %v1735 = vadd.f32 %v1694, %v1734
  %v1736 = vpop.f32.mrb[0].mxu0
  %v1737 = vpop.f32.mrb[0].mxu0
  %1738 = vdwg.mxu0
  %1739 = vmatprep.subr.bf16.mxu0 0
  %1740 = vmatpush1.bf16.msra.mxu0 %v1133
  %1741 = vmatprep.subr.bf16.mxu0 0
  %1742 = vmatpush1.bf16.msra.mxu0 %v1138
  %1743 = vmatprep.subr.bf16.mxu0 0
  %1744 = vmatpush1.bf16.msra.mxu0 %v1143
  %1745 = vmatprep.subr.bf16.mxu0 0
  %1746 = vmatpush1.bf16.msra.mxu0 %v1148
  %1747 = vmatprep.subr.bf16.mxu0 0
  %1748 = vmatpush1.bf16.msra.mxu0 %v1153
  %1749 = vmatprep.subr.bf16.mxu0 0
  %1750 = vmatpush1.bf16.msra.mxu0 %v1158
  %1751 = vmatprep.subr.bf16.mxu0 0
  %1752 = vmatpush1.bf16.msra.mxu0 %v1163
  %1753 = vmatprep.subr.bf16.mxu0 0
  %1754 = vmatpush1.bf16.msra.mxu0 %v1168
  %1755 = vmatprep.subr.bf16.mxu0 0
  %1756 = vmatpush1.bf16.msra.mxu0 %v1173
  %1757 = vmatprep.subr.bf16.mxu0 0
  %1758 = vmatpush1.bf16.msra.mxu0 %v1178
  %1759 = vmatprep.subr.bf16.mxu0 0
  %1760 = vmatpush1.bf16.msra.mxu0 %v1183
  %1761 = vmatprep.subr.bf16.mxu0 0
  %1762 = vmatpush1.bf16.msra.mxu0 %v1188
  %1763 = vmatprep.subr.bf16.mxu0 0
  %1764 = vmatpush1.bf16.msra.mxu0 %v1193
  %1765 = vmatprep.subr.bf16.mxu0 0
  %1766 = vmatpush1.bf16.msra.mxu0 %v1198
  %1767 = vmatprep.subr.bf16.mxu0 0
  %1768 = vmatpush1.bf16.msra.mxu0 %v1203
  %1769 = vmatprep.subr.bf16.mxu0 0
  %1770 = vmatpush1.bf16.msra.mxu0 %v1208
  %1771 = vmatprep.mubr.bf16.mxu0 %v306
  %1772 = vmatmul.mubr.bf16.gmra.mrb[0].mxu0 %v305
  %v1773 = vpop.f32.mrb[0].mxu0
  %v1774 = vadd.f32 %v547, %v1773
  %v1775 = vpop.f32.mrb[0].mxu0
  %v1776 = vpop.f32.mrb[0].mxu0
  %v1777 = vpop.f32.mrb[0].mxu0
  %1778 = vdwg.mxu0
  %1779 = vmatprep.subr.bf16.mxu0 0
  %1780 = vmatpush1.bf16.msra.mxu0 %v1213
  %1781 = vmatprep.subr.bf16.mxu0 0
  %1782 = vmatpush1.bf16.msra.mxu0 %v1218
  %1783 = vmatprep.subr.bf16.mxu0 0
  %1784 = vmatpush1.bf16.msra.mxu0 %v1223
  %1785 = vmatprep.subr.bf16.mxu0 0
  %1786 = vmatpush1.bf16.msra.mxu0 %v1228
  %1787 = vmatprep.subr.bf16.mxu0 0
  %1788 = vmatpush1.bf16.msra.mxu0 %v1233
  %1789 = vmatprep.subr.bf16.mxu0 0
  %1790 = vmatpush1.bf16.msra.mxu0 %v1238
  %1791 = vmatprep.subr.bf16.mxu0 0
  %1792 = vmatpush1.bf16.msra.mxu0 %v1243
  %1793 = vmatprep.subr.bf16.mxu0 0
  %1794 = vmatpush1.bf16.msra.mxu0 %v1248
  %1795 = vmatprep.subr.bf16.mxu0 0
  %1796 = vmatpush1.bf16.msra.mxu0 %v1253
  %1797 = vmatprep.subr.bf16.mxu0 0
  %1798 = vmatpush1.bf16.msra.mxu0 %v1258
  %1799 = vmatprep.subr.bf16.mxu0 0
  %1800 = vmatpush1.bf16.msra.mxu0 %v1263
  %1801 = vmatprep.subr.bf16.mxu0 0
  %1802 = vmatpush1.bf16.msra.mxu0 %v1268
  %1803 = vmatprep.subr.bf16.mxu0 0
  %1804 = vmatpush1.bf16.msra.mxu0 %v1273
  %1805 = vmatprep.subr.bf16.mxu0 0
  %1806 = vmatpush1.bf16.msra.mxu0 %v1278
  %1807 = vmatprep.subr.bf16.mxu0 0
  %1808 = vmatpush1.bf16.msra.mxu0 %v1283
  %1809 = vmatprep.subr.bf16.mxu0 0
  %1810 = vmatpush1.bf16.msra.mxu0 %v1288
  %1811 = vmatprep.mubr.bf16.mxu0 %v308
  %1812 = vmatmul.mubr.bf16.gmra.mrb[0].mxu0 %v307
  %v1813 = vpop.f32.mrb[0].mxu0
  %v1814 = vadd.f32 %v1774, %v1813
  %v1815 = vpop.f32.mrb[0].mxu0
  %v1816 = vpop.f32.mrb[0].mxu0
  %v1817 = vpop.f32.mrb[0].mxu0
  %1818 = vdwg.mxu0
  %1819 = vmatprep.subr.bf16.mxu0 0
  %1820 = vmatpush1.bf16.msra.mxu0 %v1293
  %1821 = vmatprep.subr.bf16.mxu0 0
  %1822 = vmatpush1.bf16.msra.mxu0 %v1298
  %1823 = vmatprep.subr.bf16.mxu0 0
  %1824 = vmatpush1.bf16.msra.mxu0 %v1303
  %1825 = vmatprep.subr.bf16.mxu0 0
  %1826 = vmatpush1.bf16.msra.mxu0 %v1308
  %1827 = vmatprep.subr.bf16.mxu0 0
  %1828 = vmatpush1.bf16.msra.mxu0 0
  %1829 = vmatprep.subr.bf16.mxu0 0
  %1830 = vmatpush1.bf16.msra.mxu0 0
  %1831 = vmatprep.subr.bf16.mxu0 0
  %1832 = vmatpush1.bf16.msra.mxu0 0
  %1833 = vmatprep.subr.bf16.mxu0 0
  %1834 = vmatpush1.bf16.msra.mxu0 0
  %1835 = vmatprep.subr.bf16.mxu0 0
  %1836 = vmatpush1.bf16.msra.mxu0 0
  %1837 = vmatprep.subr.bf16.mxu0 0
  %1838 = vmatpush1.bf16.msra.mxu0 0
  %1839 = vmatprep.subr.bf16.mxu0 0
  %1840 = vmatpush1.bf16.msra.mxu0 0
  %1841 = vmatprep.subr.bf16.mxu0 0
  %1842 = vmatpush1.bf16.msra.mxu0 0
  %1843 = vmatprep.subr.bf16.mxu0 0
  %1844 = vmatpush1.bf16.msra.mxu0 0
  %1845 = vmatprep.subr.bf16.mxu0 0
  %1846 = vmatpush1.bf16.msra.mxu0 0
  %1847 = vmatprep.subr.bf16.mxu0 0
  %1848 = vmatpush1.bf16.msra.mxu0 0
  %1849 = vmatprep.subr.bf16.mxu0 0
  %1850 = vmatpush1.bf16.msra.mxu0 0
  %1851 = vmatprep.mubr.bf16.mxu0 0
  %1852 = vmatmul.mubr.bf16.gmra.mrb[0].mxu0 %v1491
  %v1853 = vpop.f32.mrb[0].mxu0
  %v1854 = vadd.f32 %v1814, %v1853
  %v1855 = vpop.f32.mrb[0].mxu0
  %v1856 = vpop.f32.mrb[0].mxu0
  %v1857 = vpop.f32.mrb[0].mxu0
  %1858 = vdwg.mxu0
  %v1859 = vtanh.pop %v1610
  %v1860 = vtanh.pop %v1612
  %v1861 = vtanh.pop %v1733
  %v1862 = vtanh.pop %v1735
  %v1863 = vtanh.pop %v1854
  %v1864 = vld [vmem:[%s5] sm:$0x1f]
  %v1866 = vlaneseq
  %v1867 = vshrl.u32 %v1866, 7
  %v1868 = vsub.s32 0, %v1867
  %v1869 = vrot.slane %v1864, %v1868
  %v1870 = vlaneseq
  %v1871 = vshrl.u32 %v1870, 7
  %v1872 = vsub.s32 1, %v1871
  %v1873 = vrot.slane %v1864, %v1872
  %v1874 = vlaneseq
  %v1875 = vshrl.u32 %v1874, 7
  %v1876 = vsub.s32 2, %v1875
  %v1877 = vrot.slane %v1864, %v1876
  %v1878 = vlaneseq
  %v1879 = vshrl.u32 %v1878, 7
  %v1880 = vsub.s32 3, %v1879
  %v1881 = vrot.slane %v1864, %v1880
  %v1882 = vlaneseq
  %v1883 = vshrl.u32 %v1882, 7
  %v1884 = vsub.s32 4, %v1883
  %v1885 = vrot.slane %v1864, %v1884
  %v1891 = vmul.f32 %v1859, %v1869
  %v1892 = vmul.f32 %v1860, %v1873
  %v1893 = vmul.f32 %v1861, %v1877
  %v1894 = vmul.f32 %v1862, %v1881
  %v1895 = vmul.f32 %v1863, %v1885
  %v1896 = vadd.f32 %v1891, %v1892
  %v1897 = vadd.f32 %v1896, %v1893
  %v1898 = vadd.f32 %v1897, %v1894
  %v1899 = vsel %vm1489, %v1895, 0.0
  %v1900 = vadd.f32 %v1898, %v1899
  %1901 = vadd.xlane.f32.xlu0 %v1900
  %v1902 = vpop.xlane.xlu0 %1901
  %v1903 = vld [vmem:[#allocation2] sm:$0x1]
  %v1905 = vlaneseq
  %v1906 = vshrl.u32 %v1905, 7
  %v1907 = vsub.s32 0, %v1906
  %v1908 = vrot.slane %v1903, %v1907
  %v1910 = vadd.f32 %v1902, %v1908
  %vm1911 = vcmask 7168
  %1912 = vst.msk [vmem:[%s7] sm:$0xff] %vm1911, %v1910
  // Predicated region
  $region30: #{hamiltonian_net_forward.1} parent=0 // pred_check
    _
  $region31: #{hamiltonian_net_forward.1} parent=0 // pred_check_branch
    %1914 = sbr.rel (0) target = $region33
  $region32: #{hamiltonian_net_forward.1} parent=0 // pred_region
    _
  $region33: #{hamiltonian_net_forward.1} parent=0 // pred_fallthru
    _
  // Predicated region
  $region34: #{hamiltonian_net_forward.1} parent=0 // pred_check
    _
  $region35: #{hamiltonian_net_forward.1} parent=0 // pred_check_branch
    %1916 = sbr.rel (0) target = $region37
  $region36: #{hamiltonian_net_forward.1} parent=0 // pred_region
    _
  $region37: #{hamiltonian_net_forward.1} parent=0 // pred_fallthru
    _

</llo_original>
